<compile_context>
chip_gen: v5e
topology: v5e:2x2
jax: 0.10.0
libtpu: 0.0.40
codegen_flags: <defaults>
</compile_context>

<pallas_src>
import functools
import itertools

import numpy as np
import jax
import jax.numpy as jnp
from jax import lax
from jax.experimental import pallas as pl
from jax.experimental.pallas import tpu as pltpu


def _round_up(x: int, m: int) -> int:
    return ((x + m - 1) // m) * m


# ----------------------------- Pallas kernel --------------------------------
# Feature layout (index in the 16-wide feature arrays):
#   0:cx  1:cy  2:w  3:h  4:x0  5:y0  6:x1  7:y1  8:area  9..15: zero padding
def _cost_kernel(logits_ref, onehot_t_ref, pfeat_ref, tfeat_ref, c_ref,
                 *, w_bbox: float, w_giou: float, n_chunks: int, ch: int):
    tf = tfeat_ref[...]                              # [16, M_pad] (tiny, hoisted)

    def chunk_body(i, carry):
        r0 = pl.multiple_of(i * ch, ch)
        lg = logits_ref[pl.ds(r0, ch), :]            # [ch, C_pad]
        pf = pfeat_ref[pl.ds(r0, ch), :]             # [ch, 16]

        # ---- cost_class: softmax gather via (-w_class)-scaled one-hot matmul,
        #      normalization folded into a single post-matmul scale.
        mx = jnp.max(lg, axis=-1, keepdims=True)
        ex = jnp.exp(lg - mx)
        s = jnp.sum(ex, axis=-1, keepdims=True)
        gathered = jnp.dot(ex, onehot_t_ref[...],
                           preferred_element_type=jnp.float32)    # [ch, M_pad]
        cls_term = gathered * pl.reciprocal(s)       # = -w_class * prob[:, tgt_ids]

        # ---- cost_bbox: pairwise L1 (torch.cdist, p=1) on cxcywh
        cb = (jnp.abs(pf[:, 0:1] - tf[0:1, :]) + jnp.abs(pf[:, 1:2] - tf[1:2, :])
              + jnp.abs(pf[:, 2:3] - tf[2:3, :]) + jnp.abs(pf[:, 3:4] - tf[3:4, :]))

        # ---- IoU / GIoU on precomputed xyxy corners & areas.
        #      min/max computed once; enclosing extents reuse them algebraically.
        dx = jnp.minimum(pf[:, 6:7], tf[6:7, :]) - jnp.maximum(pf[:, 4:5], tf[4:5, :])
        dy = jnp.minimum(pf[:, 7:8], tf[7:8, :]) - jnp.maximum(pf[:, 5:6], tf[5:6, :])
        inter = jnp.maximum(dx, 0.0) * jnp.maximum(dy, 0.0)       # [ch, M_pad]
        union = pf[:, 8:9] + tf[8:9, :] - inter
        iou = inter * pl.reciprocal(union, approx=True)
        en_area = ((pf[:, 2:3] + tf[2:3, :]) - dx) * ((pf[:, 3:4] + tf[3:4, :]) - dy)
        giou = iou - (en_area - union) * pl.reciprocal(en_area + 1e-6, approx=True)

        c_ref[pl.ds(r0, ch), :] = w_bbox * cb + cls_term - w_giou * giou
        return carry

    lax.fori_loop(0, n_chunks, chunk_body, 0, unroll=True)


def _box_features(boxes, width: int = 16):
    # boxes: [K, 4] cxcywh -> [K, width] features: cx,cy,w,h,x0,y0,x1,y1,area,0..
    cx, cy, w, h = boxes[:, 0], boxes[:, 1], boxes[:, 2], boxes[:, 3]
    x0 = cx - 0.5 * w
    y0 = cy - 0.5 * h
    x1 = cx + 0.5 * w
    y1 = cy + 0.5 * h
    area = w * h
    feats = jnp.stack([cx, cy, w, h, x0, y0, x1, y1, area], axis=-1)
    return jnp.pad(feats, ((0, 0), (0, width - feats.shape[-1])))


def compute_cost_matrix(pred_logits, pred_boxes, tgt_ids, tgt_boxes,
                        cost_class=1.0, cost_bbox=1.0, cost_giou=1.0,
                        tile_n=1024, row_chunk=128):
    bs, nq, num_classes = pred_logits.shape
    N = bs * nq
    M = int(tgt_ids.shape[0])

    LANE = 128
    SUBLANE = 8
    c_pad = _round_up(num_classes, LANE)
    m_pad = _round_up(max(M, 1), LANE)

    CH = max(SUBLANE, _round_up(int(row_chunk), SUBLANE))

    # VMEM budget guard: ~12 MiB of double-buffered per-tile traffic (logits +
    # output + pred features), covers v5e's 16 MiB scoped default and v7x's
    # smaller physical VMEM even with very large class counts.
    bytes_per_row = 4 * (c_pad + m_pad + 16)
    max_rows = max(CH, (((12 << 20) // (2 * bytes_per_row)) // CH) * CH)
    tn = max(CH, (min(int(tile_n), max_rows) // CH) * CH)
    n_chunks_total = -(-N // CH)
    if n_chunks_total >= 2:
        # Keep >= 2 grid tiles so both v7x TensorCores get work on the
        # "parallel" axis.
        half_rows = ((n_chunks_total + 1) // 2) * CH
        tn = min(tn, half_rows)
    else:
        tn = CH
    n_pad = _round_up(N, tn)
    chunks_per_tile = tn // CH

    # logits: pad rows and class columns with a very negative value so the
    # softmax of real rows is unchanged (padded classes contribute exp(-huge)=0)
    logits = pred_logits.reshape(N, num_classes).astype(jnp.float32)
    logits = jnp.pad(logits, ((0, n_pad - N), (0, c_pad - num_classes)),
                     constant_values=-1e30)

    pbox = pred_boxes.reshape(N, 4).astype(jnp.float32)
    pbox = jnp.pad(pbox, ((0, n_pad - N), (0, 0)))
    pfeat = _box_features(pbox)                                   # [n_pad, 16]

    # (-w_class)-scaled one-hot gather matrix: folds sign + weight into the MXU op
    onehot_t = jax.nn.one_hot(tgt_ids, num_classes, dtype=jnp.float32).T  # [C, M]
    onehot_t = jnp.pad(onehot_t, ((0, c_pad - num_classes), (0, m_pad - M)))
    onehot_t = (-float(cost_class)) * onehot_t

    # target boxes padded with unit dummy boxes (finite IoU terms), then features
    tbox = tgt_boxes[:, :4].astype(jnp.float32)
    pad_box = jnp.tile(jnp.array([[0.5, 0.5, 1.0, 1.0]], jnp.float32),
                       (m_pad - M, 1))
    tbox = jnp.concatenate([tbox, pad_box], axis=0)
    tfeat = _box_features(tbox).T                                 # [16, m_pad]

    kernel = functools.partial(_cost_kernel,
                               w_bbox=float(cost_bbox), w_giou=float(cost_giou),
                               n_chunks=chunks_per_tile, ch=CH)

    grid = (n_pad // tn,)
    C = pl.pallas_call(
        kernel,
        out_shape=jax.ShapeDtypeStruct((n_pad, m_pad), jnp.float32),
        grid=grid,
        in_specs=[
            pl.BlockSpec((tn, c_pad), lambda i: (i, 0)),
            pl.BlockSpec((c_pad, m_pad), lambda i: (0, 0)),
            pl.BlockSpec((tn, 16), lambda i: (i, 0)),
            pl.BlockSpec((16, m_pad), lambda i: (0, 0)),
        ],
        out_specs=pl.BlockSpec((tn, m_pad), lambda i: (i, 0)),
        compiler_params=pltpu.CompilerParams(
            dimension_semantics=("parallel",)),
    )(logits, onehot_t, pfeat, tfeat)

    return C[:N, :M].reshape(bs, nq, M)


# ------------------------- host-side assignment ------------------------------
def _linear_sum_assignment_bruteforce(cost):
    # TODO(synk): the Hungarian algorithm (scipy.optimize.linear_sum_assignment)
    # has no clean Pallas/TPU equivalent; solved exactly on host by enumeration
    # (shapes here are tiny: num_queries <= 8).
    cost = np.asarray(cost, dtype=np.float64)
    n, m = cost.shape
    if n < m:
        cols, rows = _linear_sum_assignment_bruteforce(cost.T)
        order = np.argsort(rows)
        return rows[order], cols[order]
    best_val, best_perm = None, None
    for perm in itertools.permutations(range(n), m):
        val = sum(cost[perm[j], j] for j in range(m))
        if best_val is None or val < best_val:
            best_val, best_perm = val, perm
    rows = np.asarray(best_perm, dtype=np.int64)
    cols = np.arange(m, dtype=np.int64)
    order = np.argsort(rows)
    return rows[order], cols[order]


def hungarian_matcher(outputs, targets, cost_class=1.0, cost_bbox=1.0, cost_giou=1.0):
    pred_logits = outputs["pred_logits"]
    pred_boxes = outputs["pred_boxes"]
    tgt_ids = jnp.concatenate([t["labels"] for t in targets])
    tgt_boxes = jnp.concatenate([t["boxes"][..., :4] for t in targets])

    C = compute_cost_matrix(pred_logits, pred_boxes, tgt_ids, tgt_boxes,
                            cost_class, cost_bbox, cost_giou)
    C = jax.block_until_ready(C)
    C_np = np.asarray(C)
    # matches linear_sum_assignment_with_inf: NaNs -> large finite cost
    C_np = np.where(np.isnan(C_np), 1e5, C_np)

    sizes = [int(t["boxes"].shape[0]) for t in targets]
    indices, offset = [], 0
    for i, sz in enumerate(sizes):
        rows, cols = _linear_sum_assignment_bruteforce(C_np[i, :, offset:offset + sz])
        indices.append((rows, cols))
        offset += sz
    return indices, C


# ----------------------------- numpy reference -------------------------------
def _reference_cost(pred_logits, pred_boxes, tgt_ids, tgt_boxes, wc, wb, wg):
    pl_np = np.asarray(pred_logits, np.float64)
    pb_np = np.asarray(pred_boxes, np.float64)
    ids = np.asarray(tgt_ids)
    tb_np = np.asarray(tgt_boxes, np.float64)[:, :4]
    bs, nq, ncls = pl_np.shape
    logits = pl_np.reshape(-1, ncls)
    prob = np.exp(logits - logits.max(-1, keepdims=True))
    prob = prob / prob.sum(-1, keepdims=True)
    cost_class = -prob[:, ids]
    ob = pb_np.reshape(-1, 4)
    cost_bbox = np.abs(ob[:, None, :] - tb_np[None, :, :]).sum(-1)

    def to_xyxy(b):
        return np.stack([b[:, 0] - 0.5 * b[:, 2], b[:, 1] - 0.5 * b[:, 3],
                         b[:, 0] + 0.5 * b[:, 2], b[:, 1] + 0.5 * b[:, 3]], -1)

    b1, b2 = to_xyxy(ob), to_xyxy(tb_np)
    a1 = (b1[:, 2] - b1[:, 0]) * (b1[:, 3] - b1[:, 1])
    a2 = (b2[:, 2] - b2[:, 0]) * (b2[:, 3] - b2[:, 1])
    lt = np.maximum(b1[:, None, :2], b2[None, :, :2])
    rb = np.minimum(b1[:, None, 2:], b2[None, :, 2:])
    wh = np.clip(rb - lt, 0, None)
    inter = wh[..., 0] * wh[..., 1]
    union = a1[:, None] + a2[None, :] - inter
    iou = inter / union
    lt2 = np.minimum(b1[:, None, :2], b2[None, :, :2])
    rb2 = np.maximum(b1[:, None, 2:], b2[None, :, 2:])
    wh2 = np.clip(rb2 - lt2, 0, None)
    area = wh2[..., 0] * wh2[..., 1]
    giou = iou - (area - union) / (area + 1e-6)
    C = wb * cost_bbox + wc * cost_class + wg * (-giou)
    return C.reshape(bs, nq, -1)


# ---------------------------------- main --------------------------------------
if __name__ == "__main__":
    key = jax.random.PRNGKey(0)
    bs, nq, ncls = 2, 8, 7
    k1, k2, k3, k4 = jax.random.split(key, 4)

    pred_logits = jax.random.normal(k1, (bs, nq, ncls), jnp.float32)
    pred_cxcy = jax.random.uniform(k2, (bs, nq, 2), minval=0.25, maxval=0.75)
    pred_wh = jax.random.uniform(k3, (bs, nq, 2), minval=0.05, maxval=0.30)
    pred_boxes = jnp.concatenate([pred_cxcy, pred_wh], axis=-1)

    sizes = [3, 5]
    targets = []
    tkeys = jax.random.split(k4, 3 * len(sizes))
    for i, sz in enumerate(sizes):
        labels = jax.random.randint(tkeys[3 * i], (sz,), 0, ncls)
        cxcy = jax.random.uniform(tkeys[3 * i + 1], (sz, 2), minval=0.25, maxval=0.75)
        wh = jax.random.uniform(tkeys[3 * i + 2], (sz, 2), minval=0.05, maxval=0.30)
        targets.append({"labels": labels, "boxes": jnp.concatenate([cxcy, wh], axis=-1)})

    outputs = {"pred_logits": pred_logits, "pred_boxes": pred_boxes}
    indices, C = hungarian_matcher(outputs, targets, 1.0, 1.0, 1.0)
    C = jax.block_until_ready(C)

    # correctness check of the Pallas-computed cost matrix against numpy reference
    # (tolerance loosened to 1e-2 because the IoU/GIoU divides use the EUP
    #  approximate reciprocal; assignment results are unaffected)
    tgt_ids = jnp.concatenate([t["labels"] for t in targets])
    tgt_boxes = jnp.concatenate([t["boxes"] for t in targets])
    C_ref = _reference_cost(pred_logits, pred_boxes, tgt_ids, tgt_boxes, 1.0, 1.0, 1.0)
    np.testing.assert_allclose(np.asarray(C), C_ref, rtol=1e-2, atol=1e-2)

    print("KERNEL_OK")
</pallas_src>

<mosaic_0001>
module attributes {stable_mosaic.version = 11 : i64} {
  func.func @_cost_kernel(%arg0: i32, %arg1: memref<128x128xf32, #tpu.memory_space<vmem>>, %arg2: memref<128x128xf32, #tpu.memory_space<vmem>>, %arg3: memref<128x16xf32, #tpu.memory_space<vmem>>, %arg4: memref<16x128xf32, #tpu.memory_space<vmem>>, %arg5: memref<128x128xf32, #tpu.memory_space<vmem>>) attributes {dimension_semantics = [#tpu.dimension_semantics<parallel>], iteration_bounds = array<i64: 1>, scalar_prefetch = 0 : i64, scratch_operands = 0 : i64, tpu.core_type = #tpu.core_type<tc>, window_params = [{transform_indices = @transform_0, window_bounds = array<i64: 128, 128>}, {pipeline_mode = #tpu.pipeline_mode<synchronous>, transform_indices = @transform_1, window_bounds = array<i64: 128, 128>}, {transform_indices = @transform_2, window_bounds = array<i64: 128, 16>}, {pipeline_mode = #tpu.pipeline_mode<synchronous>, transform_indices = @transform_3, window_bounds = array<i64: 16, 128>}, {transform_indices = @transform_4, window_bounds = array<i64: 128, 128>}]} {
    %c0 = arith.constant 0 : index
    %c0_0 = arith.constant 0 : index
    %0 = vector.load %arg4[%c0, %c0_0] : memref<16x128xf32, #tpu.memory_space<vmem>>, vector<16x128xf32>
    %c0_i32 = arith.constant 0 : i32
    %c128_i32 = arith.constant 128 : i32
    %1 = arith.muli %c0_i32, %c128_i32 : i32
    %2 = tpu.assume_multiple %1, 128 : i32
    %3 = arith.index_cast %2 : i32 to index
    %c0_1 = arith.constant 0 : index
    %4 = vector.load %arg1[%3, %c0_1] : memref<128x128xf32, #tpu.memory_space<vmem>>, vector<128x128xf32>
    %5 = arith.index_cast %2 : i32 to index
    %c0_2 = arith.constant 0 : index
    %6 = vector.load %arg3[%5, %c0_2] : memref<128x16xf32, #tpu.memory_space<vmem>>, vector<128x16xf32>
    %cst = arith.constant dense<0xFF800000> : vector<128xf32>
    %7 = vector.multi_reduction <maximumf>, %4, %cst [1] : vector<128x128xf32> to vector<128xf32>
    %8 = vector.shape_cast %7 : vector<128xf32> to vector<128x1xf32>
    %9 = vector.broadcast %8 : vector<128x1xf32> to vector<128x128xf32>
    %10 = arith.subf %4, %9 : vector<128x128xf32>
    %11 = math.exp %10 : vector<128x128xf32>
    %cst_3 = arith.constant dense<0.000000e+00> : vector<128xf32>
    %12 = vector.multi_reduction <add>, %11, %cst_3 [1] : vector<128x128xf32> to vector<128xf32>
    %13 = vector.shape_cast %12 : vector<128xf32> to vector<128x1xf32>
    %c0_4 = arith.constant 0 : index
    %c0_5 = arith.constant 0 : index
    %14 = vector.load %arg2[%c0_4, %c0_5] : memref<128x128xf32, #tpu.memory_space<vmem>>, vector<128x128xf32>
    %cst_6 = arith.constant dense<0.000000e+00> : vector<128x128xf32>
    %15 = tpu.matmul %11, %14, %cst_6 {dimension_numbers = #tpu.dot_dimension_numbers<[1], [0], [0], [1], [0, 0, 1, 1], [], []>} : vector<128x128xf32>, vector<128x128xf32>, vector<128x128xf32> -> vector<128x128xf32>
    %16 = tpu.reciprocal %13 : vector<128x1xf32> -> vector<128x1xf32>
    %17 = vector.broadcast %16 : vector<128x1xf32> to vector<128x128xf32>
    %18 = arith.mulf %15, %17 : vector<128x128xf32>
    %19 = vector.extract_strided_slice %6 {offsets = [0, 0], sizes = [128, 1], strides = [1, 1]} : vector<128x16xf32> to vector<128x1xf32>
    %20 = vector.extract_strided_slice %0 {offsets = [0, 0], sizes = [1, 128], strides = [1, 1]} : vector<16x128xf32> to vector<1x128xf32>
    %21 = vector.broadcast %19 : vector<128x1xf32> to vector<128x128xf32>
    %22 = vector.broadcast %20 : vector<1x128xf32> to vector<128x128xf32>
    %23 = arith.subf %21, %22 : vector<128x128xf32>
    %24 = math.absf %23 : vector<128x128xf32>
    %25 = vector.extract_strided_slice %6 {offsets = [0, 1], sizes = [128, 1], strides = [1, 1]} : vector<128x16xf32> to vector<128x1xf32>
    %26 = vector.extract_strided_slice %0 {offsets = [1, 0], sizes = [1, 128], strides = [1, 1]} : vector<16x128xf32> to vector<1x128xf32>
    %27 = vector.broadcast %25 : vector<128x1xf32> to vector<128x128xf32>
    %28 = vector.broadcast %26 : vector<1x128xf32> to vector<128x128xf32>
    %29 = arith.subf %27, %28 : vector<128x128xf32>
    %30 = math.absf %29 : vector<128x128xf32>
    %31 = arith.addf %24, %30 : vector<128x128xf32>
    %32 = vector.extract_strided_slice %6 {offsets = [0, 2], sizes = [128, 1], strides = [1, 1]} : vector<128x16xf32> to vector<128x1xf32>
    %33 = vector.extract_strided_slice %0 {offsets = [2, 0], sizes = [1, 128], strides = [1, 1]} : vector<16x128xf32> to vector<1x128xf32>
    %34 = vector.broadcast %32 : vector<128x1xf32> to vector<128x128xf32>
    %35 = vector.broadcast %33 : vector<1x128xf32> to vector<128x128xf32>
    %36 = arith.subf %34, %35 : vector<128x128xf32>
    %37 = math.absf %36 : vector<128x128xf32>
    %38 = arith.addf %31, %37 : vector<128x128xf32>
    %39 = vector.extract_strided_slice %6 {offsets = [0, 3], sizes = [128, 1], strides = [1, 1]} : vector<128x16xf32> to vector<128x1xf32>
    %40 = vector.extract_strided_slice %0 {offsets = [3, 0], sizes = [1, 128], strides = [1, 1]} : vector<16x128xf32> to vector<1x128xf32>
    %41 = vector.broadcast %39 : vector<128x1xf32> to vector<128x128xf32>
    %42 = vector.broadcast %40 : vector<1x128xf32> to vector<128x128xf32>
    %43 = arith.subf %41, %42 : vector<128x128xf32>
    %44 = math.absf %43 : vector<128x128xf32>
    %45 = arith.addf %38, %44 : vector<128x128xf32>
    %46 = vector.extract_strided_slice %6 {offsets = [0, 6], sizes = [128, 1], strides = [1, 1]} : vector<128x16xf32> to vector<128x1xf32>
    %47 = vector.extract_strided_slice %0 {offsets = [6, 0], sizes = [1, 128], strides = [1, 1]} : vector<16x128xf32> to vector<1x128xf32>
    %48 = vector.broadcast %46 : vector<128x1xf32> to vector<128x128xf32>
    %49 = vector.broadcast %47 : vector<1x128xf32> to vector<128x128xf32>
    %50 = arith.minimumf %48, %49 : vector<128x128xf32>
    %51 = vector.extract_strided_slice %6 {offsets = [0, 4], sizes = [128, 1], strides = [1, 1]} : vector<128x16xf32> to vector<128x1xf32>
    %52 = vector.extract_strided_slice %0 {offsets = [4, 0], sizes = [1, 128], strides = [1, 1]} : vector<16x128xf32> to vector<1x128xf32>
    %53 = vector.broadcast %51 : vector<128x1xf32> to vector<128x128xf32>
    %54 = vector.broadcast %52 : vector<1x128xf32> to vector<128x128xf32>
    %55 = arith.maximumf %53, %54 : vector<128x128xf32>
    %56 = arith.subf %50, %55 : vector<128x128xf32>
    %57 = vector.extract_strided_slice %6 {offsets = [0, 7], sizes = [128, 1], strides = [1, 1]} : vector<128x16xf32> to vector<128x1xf32>
    %58 = vector.extract_strided_slice %0 {offsets = [7, 0], sizes = [1, 128], strides = [1, 1]} : vector<16x128xf32> to vector<1x128xf32>
    %59 = vector.broadcast %57 : vector<128x1xf32> to vector<128x128xf32>
    %60 = vector.broadcast %58 : vector<1x128xf32> to vector<128x128xf32>
    %61 = arith.minimumf %59, %60 : vector<128x128xf32>
    %62 = vector.extract_strided_slice %6 {offsets = [0, 5], sizes = [128, 1], strides = [1, 1]} : vector<128x16xf32> to vector<128x1xf32>
    %63 = vector.extract_strided_slice %0 {offsets = [5, 0], sizes = [1, 128], strides = [1, 1]} : vector<16x128xf32> to vector<1x128xf32>
    %64 = vector.broadcast %62 : vector<128x1xf32> to vector<128x128xf32>
    %65 = vector.broadcast %63 : vector<1x128xf32> to vector<128x128xf32>
    %66 = arith.maximumf %64, %65 : vector<128x128xf32>
    %67 = arith.subf %61, %66 : vector<128x128xf32>
    %cst_7 = arith.constant 0.000000e+00 : f32
    %68 = vector.broadcast %cst_7 : f32 to vector<128x128xf32>
    %69 = arith.maximumf %56, %68 : vector<128x128xf32>
    %cst_8 = arith.constant 0.000000e+00 : f32
    %70 = vector.broadcast %cst_8 : f32 to vector<128x128xf32>
    %71 = arith.maximumf %67, %70 : vector<128x128xf32>
    %72 = arith.mulf %69, %71 : vector<128x128xf32>
    %73 = vector.extract_strided_slice %6 {offsets = [0, 8], sizes = [128, 1], strides = [1, 1]} : vector<128x16xf32> to vector<128x1xf32>
    %74 = vector.extract_strided_slice %0 {offsets = [8, 0], sizes = [1, 128], strides = [1, 1]} : vector<16x128xf32> to vector<1x128xf32>
    %75 = vector.broadcast %73 : vector<128x1xf32> to vector<128x128xf32>
    %76 = vector.broadcast %74 : vector<1x128xf32> to vector<128x128xf32>
    %77 = arith.addf %75, %76 : vector<128x128xf32>
    %78 = arith.subf %77, %72 : vector<128x128xf32>
    %79 = tpu.reciprocal %78 {approx = true} : vector<128x128xf32> -> vector<128x128xf32>
    %80 = arith.mulf %72, %79 : vector<128x128xf32>
    %81 = vector.extract_strided_slice %6 {offsets = [0, 2], sizes = [128, 1], strides = [1, 1]} : vector<128x16xf32> to vector<128x1xf32>
    %82 = vector.extract_strided_slice %0 {offsets = [2, 0], sizes = [1, 128], strides = [1, 1]} : vector<16x128xf32> to vector<1x128xf32>
    %83 = vector.broadcast %81 : vector<128x1xf32> to vector<128x128xf32>
    %84 = vector.broadcast %82 : vector<1x128xf32> to vector<128x128xf32>
    %85 = arith.addf %83, %84 : vector<128x128xf32>
    %86 = arith.subf %85, %56 : vector<128x128xf32>
    %87 = vector.extract_strided_slice %6 {offsets = [0, 3], sizes = [128, 1], strides = [1, 1]} : vector<128x16xf32> to vector<128x1xf32>
    %88 = vector.extract_strided_slice %0 {offsets = [3, 0], sizes = [1, 128], strides = [1, 1]} : vector<16x128xf32> to vector<1x128xf32>
    %89 = vector.broadcast %87 : vector<128x1xf32> to vector<128x128xf32>
    %90 = vector.broadcast %88 : vector<1x128xf32> to vector<128x128xf32>
    %91 = arith.addf %89, %90 : vector<128x128xf32>
    %92 = arith.subf %91, %67 : vector<128x128xf32>
    %93 = arith.mulf %86, %92 : vector<128x128xf32>
    %94 = arith.subf %93, %78 : vector<128x128xf32>
    %cst_9 = arith.constant 9.99999997E-7 : f32
    %95 = vector.broadcast %cst_9 : f32 to vector<128x128xf32>
    %96 = arith.addf %93, %95 : vector<128x128xf32>
    %97 = tpu.reciprocal %96 {approx = true} : vector<128x128xf32> -> vector<128x128xf32>
    %98 = arith.mulf %94, %97 : vector<128x128xf32>
    %99 = arith.subf %80, %98 : vector<128x128xf32>
    %cst_10 = arith.constant 1.000000e+00 : f32
    %100 = vector.broadcast %cst_10 : f32 to vector<128x128xf32>
    %101 = arith.mulf %100, %45 : vector<128x128xf32>
    %102 = arith.addf %101, %18 : vector<128x128xf32>
    %cst_11 = arith.constant 1.000000e+00 : f32
    %103 = vector.broadcast %cst_11 : f32 to vector<128x128xf32>
    %104 = arith.mulf %103, %99 : vector<128x128xf32>
    %105 = arith.subf %102, %104 : vector<128x128xf32>
    %106 = arith.index_cast %2 : i32 to index
    %c0_12 = arith.constant 0 : index
    %107 = vector.load %arg5[%106, %c0_12] : memref<128x128xf32, #tpu.memory_space<vmem>>, vector<128x128xf32>
    tpu.vector_store %arg5[%106, %c0_12], %105 {strides = array<i32>} : memref<128x128xf32, #tpu.memory_space<vmem>>, vector<128x128xf32>,
    %c1_i32 = arith.constant 1 : i32
    return
  }
  func.func @transform_0(%arg0: i32) -> (i32, i32) {
    %c0_i32 = arith.constant 0 : i32
    %c0_i32_0 = arith.constant 0 : i32
    return %arg0, %c0_i32 : i32, i32
  }
  func.func @transform_1(%arg0: i32) -> (i32, i32) {
    %c0_i32 = arith.constant 0 : i32
    %c0_i32_0 = arith.constant 0 : i32
    %c0_i32_1 = arith.constant 0 : i32
    return %c0_i32, %c0_i32_0 : i32, i32
  }
  func.func @transform_2(%arg0: i32) -> (i32, i32) {
    %c0_i32 = arith.constant 0 : i32
    %c0_i32_0 = arith.constant 0 : i32
    return %arg0, %c0_i32 : i32, i32
  }
  func.func @transform_3(%arg0: i32) -> (i32, i32) {
    %c0_i32 = arith.constant 0 : i32
    %c0_i32_0 = arith.constant 0 : i32
    %c0_i32_1 = arith.constant 0 : i32
    return %c0_i32, %c0_i32_0 : i32, i32
  }
  func.func @transform_4(%arg0: i32) -> (i32, i32) {
    %c0_i32 = arith.constant 0 : i32
    %c0_i32_0 = arith.constant 0 : i32
    return %arg0, %c0_i32 : i32, i32
  }
}

</mosaic_0001>

<llo_original>
// kernel: tpu_custom_call.1
$region0: #{tpu_custom_call.1}
  #allocation0 [shape = 'u32[]', space=smem, size = 0x4, offset = 0x4, fixed_abs, tag = 'smem constant byte address 0x4 - core index']
  #allocation1 [shape = 'u32[72,128]{1,0:T(1,128)}', space=vmem, size = 0x9000, scoped, tag = 'internal scratch']
  %s0 = inlined_call_operand.vmem [shape: f32[128,128], index: 0, kind: input, shape index: {}]
  %s1 = inlined_call_operand.hbm [shape: f32[128,128], index: 1, kind: input, shape index: {}]
  %s2 = inlined_call_operand.vmem [shape: f32[128,16], index: 2, kind: input, shape index: {}]
  %s3 = inlined_call_operand.vmem [shape: f32[16,128], index: 3, kind: input, shape index: {}]
  %s4 = inlined_call_operand.hbm [shape: f32[128,128], index: 4, kind: output, shape index: {}]
  %s5 = sld [smem:[#allocation0]]
  $region30: #{tpu_custom_call.1} parent=0
    _
  %s7 = ssub.s32 1, %s5
  %s8 = scalar_select 0, %s7, %s5
  $region1: #{tpu_custom_call.1} parent=0
    #allocation2 [shape = 'u8[65536]{0}', space=vmem, size = 0x10000, scoped, tag = 'input window, operand 1, single buffered']
    #allocation3 [shape = 's32[1]{0}', space=sflag, size = 0x4, scoped, tag = 'scoped memory for tpu_custom_call.1']
    #allocation4 [shape = 's32[1]{0}', space=sflag, size = 0x4, scoped, tag = 'scoped memory for tpu_custom_call.1']
    #allocation5 [shape = 'u8[65536]{0}', space=vmem, size = 0x10000, scoped, tag = 'output window, operand 0, single buffered']
    %9 = vsyncpa [#allocation3], 0
    %10 = vsyncpa [#allocation4], 0
    // Predicated region
    $region2: #{tpu_custom_call.1} parent=1 // pred_check
      _
    $region3: #{tpu_custom_call.1} parent=1 // pred_check_branch
      %12 = sbr.rel (0) target = $region5
    $region4: #{tpu_custom_call.1} parent=1 // pred_region
      _
    $region5: #{tpu_custom_call.1} parent=1 // pred_fallthru
      _
    // Predicated region
    $region6: #{tpu_custom_call.1} parent=1 // pred_check
      _
    $region7: #{tpu_custom_call.1} parent=1 // pred_check_branch
      %14 = sbr.rel (0) target = $region9
    $region8: #{tpu_custom_call.1} parent=1 // pred_region
      %16 = vsyncadd [#allocation3], 0
      %s17 = sshll.u32 %s1, 4
      %s18 = int_to_ptr.hbm [resolvable:$true] %s17
      %s19 = sshll.u32 [#allocation2], 4
      %s20 = int_to_ptr.vmem [resolvable:$true] %s19
      %25 = dma.hbm_to_vmem [thread:$0]  %s18, 2048, %s20, [#allocation3], 128, 128, 8
    $region9: #{tpu_custom_call.1} parent=1 // pred_fallthru
      _
    // Predicated region
    $region10: #{tpu_custom_call.1} parent=1 // pred_check
      _
    $region11: #{tpu_custom_call.1} parent=1 // pred_check_branch
      %27 = sbr.rel (0) target = $region13
    $region12: #{tpu_custom_call.1} parent=1 // pred_region
      _
    $region13: #{tpu_custom_call.1} parent=1 // pred_fallthru
      _
    // Predicated region
    $region14: #{tpu_custom_call.1} parent=1 // pred_check
      _
    $region15: #{tpu_custom_call.1} parent=1 // pred_check_branch
      %29 = sbr.rel (0) target = $region17
    $region16: #{tpu_custom_call.1} parent=1 // pred_region
      _
    $region17: #{tpu_custom_call.1} parent=1 // pred_fallthru
      _
    // Predicated region
    $region18: #{tpu_custom_call.1} parent=1 // pred_check
      _
    $region19: #{tpu_custom_call.1} parent=1 // pred_check_branch
      %31 = sbr.rel (0) target = $region21
    $region20: #{tpu_custom_call.1} parent=1 // pred_region
      %33 = dma.done [#allocation3], 2048
    $region21: #{tpu_custom_call.1} parent=1 // pred_fallthru
      _
    %v34 = vld [vmem:[%s3] sm:$0xff]
    %v35 = vld [vmem:[%s3 + $0x8] sm:$0xff]
    %v36 = vld [vmem:[%s0] sm:$0xff]
    %v37 = vld [vmem:[%s0 + $0x8] sm:$0xff]
    %v38 = vld [vmem:[%s0 + $0x10] sm:$0xff]
    %v39 = vld [vmem:[%s0 + $0x18] sm:$0xff]
    %v40 = vld [vmem:[%s0 + $0x20] sm:$0xff]
    %v41 = vld [vmem:[%s0 + $0x28] sm:$0xff]
    %v42 = vld [vmem:[%s0 + $0x30] sm:$0xff]
    %v43 = vld [vmem:[%s0 + $0x38] sm:$0xff]
    %v44 = vld [vmem:[%s0 + $0x40] sm:$0xff]
    %v45 = vld [vmem:[%s0 + $0x48] sm:$0xff]
    %v46 = vld [vmem:[%s0 + $0x50] sm:$0xff]
    %v47 = vld [vmem:[%s0 + $0x58] sm:$0xff]
    %v48 = vld [vmem:[%s0 + $0x60] sm:$0xff]
    %v49 = vld [vmem:[%s0 + $0x68] sm:$0xff]
    %v50 = vld [vmem:[%s0 + $0x70] sm:$0xff]
    %v51 = vld [vmem:[%s0 + $0x78] sm:$0xff]
    %v52 = vld [vmem:[%s2] sm:$0xff]
    %v53 = vld [vmem:[%s2 + $0x8] sm:$0xff]
    %v54 = vld [vmem:[%s2 + $0x10] sm:$0xff]
    %v55 = vld [vmem:[%s2 + $0x18] sm:$0xff]
    %v56 = vld [vmem:[%s2 + $0x20] sm:$0xff]
    %v57 = vld [vmem:[%s2 + $0x28] sm:$0xff]
    %v58 = vld [vmem:[%s2 + $0x30] sm:$0xff]
    %v59 = vld [vmem:[%s2 + $0x38] sm:$0xff]
    %v60 = vld [vmem:[%s2 + $0x40] sm:$0xff]
    %v61 = vld [vmem:[%s2 + $0x48] sm:$0xff]
    %v62 = vld [vmem:[%s2 + $0x50] sm:$0xff]
    %v63 = vld [vmem:[%s2 + $0x58] sm:$0xff]
    %v64 = vld [vmem:[%s2 + $0x60] sm:$0xff]
    %v65 = vld [vmem:[%s2 + $0x68] sm:$0xff]
    %v66 = vld [vmem:[%s2 + $0x70] sm:$0xff]
    %v67 = vld [vmem:[%s2 + $0x78] sm:$0xff]
    %68 = vmax.xlane.f32.xlu0 %v36
    %v69 = vpop.xlane.xlu0 %68
    %70 = vmax.xlane.f32.xlu0 %v37
    %v71 = vpop.xlane.xlu0 %70
    %72 = vmax.xlane.f32.xlu0 %v38
    %v73 = vpop.xlane.xlu0 %72
    %74 = vmax.xlane.f32.xlu0 %v39
    %v75 = vpop.xlane.xlu0 %74
    %76 = vmax.xlane.f32.xlu0 %v40
    %v77 = vpop.xlane.xlu0 %76
    %78 = vmax.xlane.f32.xlu0 %v41
    %v79 = vpop.xlane.xlu0 %78
    %80 = vmax.xlane.f32.xlu0 %v42
    %v81 = vpop.xlane.xlu0 %80
    %82 = vmax.xlane.f32.xlu0 %v43
    %v83 = vpop.xlane.xlu0 %82
    %84 = vmax.xlane.f32.xlu0 %v44
    %v85 = vpop.xlane.xlu0 %84
    %86 = vmax.xlane.f32.xlu0 %v45
    %v87 = vpop.xlane.xlu0 %86
    %88 = vmax.xlane.f32.xlu0 %v46
    %v89 = vpop.xlane.xlu0 %88
    %90 = vmax.xlane.f32.xlu0 %v47
    %v91 = vpop.xlane.xlu0 %90
    %92 = vmax.xlane.f32.xlu0 %v48
    %v93 = vpop.xlane.xlu0 %92
    %94 = vmax.xlane.f32.xlu0 %v49
    %v95 = vpop.xlane.xlu0 %94
    %96 = vmax.xlane.f32.xlu0 %v50
    %v97 = vpop.xlane.xlu0 %96
    %98 = vmax.xlane.f32.xlu0 %v51
    %v99 = vpop.xlane.xlu0 %98
    %v100 = vsub.f32 %v36, %v69
    %v101 = vsub.f32 %v37, %v71
    %v102 = vsub.f32 %v38, %v73
    %v103 = vsub.f32 %v39, %v75
    %v104 = vsub.f32 %v40, %v77
    %v105 = vsub.f32 %v41, %v79
    %v106 = vsub.f32 %v42, %v81
    %v107 = vsub.f32 %v43, %v83
    %v108 = vsub.f32 %v44, %v85
    %v109 = vsub.f32 %v45, %v87
    %v110 = vsub.f32 %v46, %v89
    %v111 = vsub.f32 %v47, %v91
    %v112 = vsub.f32 %v48, %v93
    %v113 = vsub.f32 %v49, %v95
    %v114 = vsub.f32 %v50, %v97
    %v115 = vsub.f32 %v51, %v99
    %v116 = vmul.f32 %v100, 1.442695
    %v117 = vpow.pop %v116
    %v118 = vmul.f32 %v101, 1.442695
    %v119 = vpow.pop %v118
    %v120 = vmul.f32 %v102, 1.442695
    %v121 = vpow.pop %v120
    %v122 = vmul.f32 %v103, 1.442695
    %v123 = vpow.pop %v122
    %v124 = vmul.f32 %v104, 1.442695
    %v125 = vpow.pop %v124
    %v126 = vmul.f32 %v105, 1.442695
    %v127 = vpow.pop %v126
    %v128 = vmul.f32 %v106, 1.442695
    %v129 = vpow.pop %v128
    %v130 = vmul.f32 %v107, 1.442695
    %v131 = vpow.pop %v130
    %v132 = vmul.f32 %v108, 1.442695
    %v133 = vpow.pop %v132
    %v134 = vmul.f32 %v109, 1.442695
    %v135 = vpow.pop %v134
    %v136 = vmul.f32 %v110, 1.442695
    %v137 = vpow.pop %v136
    %v138 = vmul.f32 %v111, 1.442695
    %v139 = vpow.pop %v138
    %v140 = vmul.f32 %v112, 1.442695
    %v141 = vpow.pop %v140
    %v142 = vmul.f32 %v113, 1.442695
    %v143 = vpow.pop %v142
    %v144 = vmul.f32 %v114, 1.442695
    %v145 = vpow.pop %v144
    %v146 = vmul.f32 %v115, 1.442695
    %v147 = vpow.pop %v146
    %148 = vadd.xlane.f32.xlu0 %v117
    %v149 = vpop.xlane.xlu0 %148
    %150 = vadd.xlane.f32.xlu0 %v119
    %v151 = vpop.xlane.xlu0 %150
    %152 = vadd.xlane.f32.xlu0 %v121
    %v153 = vpop.xlane.xlu0 %152
    %154 = vadd.xlane.f32.xlu0 %v123
    %v155 = vpop.xlane.xlu0 %154
    %156 = vadd.xlane.f32.xlu0 %v125
    %v157 = vpop.xlane.xlu0 %156
    %158 = vadd.xlane.f32.xlu0 %v127
    %v159 = vpop.xlane.xlu0 %158
    %160 = vadd.xlane.f32.xlu0 %v129
    %v161 = vpop.xlane.xlu0 %160
    %162 = vadd.xlane.f32.xlu0 %v131
    %v163 = vpop.xlane.xlu0 %162
    %164 = vadd.xlane.f32.xlu0 %v133
    %v165 = vpop.xlane.xlu0 %164
    %166 = vadd.xlane.f32.xlu0 %v135
    %v167 = vpop.xlane.xlu0 %166
    %168 = vadd.xlane.f32.xlu0 %v137
    %v169 = vpop.xlane.xlu0 %168
    %170 = vadd.xlane.f32.xlu0 %v139
    %v171 = vpop.xlane.xlu0 %170
    %172 = vadd.xlane.f32.xlu0 %v141
    %v173 = vpop.xlane.xlu0 %172
    %174 = vadd.xlane.f32.xlu0 %v143
    %v175 = vpop.xlane.xlu0 %174
    %176 = vadd.xlane.f32.xlu0 %v145
    %v177 = vpop.xlane.xlu0 %176
    %178 = vadd.xlane.f32.xlu0 %v147
    %v179 = vpop.xlane.xlu0 %178
    %v180 = vld [vmem:[#allocation2] sm:$0xff]
    %v181 = vld [vmem:[#allocation2 + $0x8] sm:$0xff]
    %v182 = vld [vmem:[#allocation2 + $0x10] sm:$0xff]
    %v183 = vld [vmem:[#allocation2 + $0x18] sm:$0xff]
    %v184 = vld [vmem:[#allocation2 + $0x20] sm:$0xff]
    %v185 = vld [vmem:[#allocation2 + $0x28] sm:$0xff]
    %v186 = vld [vmem:[#allocation2 + $0x30] sm:$0xff]
    %v187 = vld [vmem:[#allocation2 + $0x38] sm:$0xff]
    %v188 = vld [vmem:[#allocation2 + $0x40] sm:$0xff]
    %v189 = vld [vmem:[#allocation2 + $0x48] sm:$0xff]
    %v190 = vld [vmem:[#allocation2 + $0x50] sm:$0xff]
    %v191 = vld [vmem:[#allocation2 + $0x58] sm:$0xff]
    %v192 = vld [vmem:[#allocation2 + $0x60] sm:$0xff]
    %v193 = vld [vmem:[#allocation2 + $0x68] sm:$0xff]
    %v194 = vld [vmem:[#allocation2 + $0x70] sm:$0xff]
    %v195 = vld [vmem:[#allocation2 + $0x78] sm:$0xff]
    %196 = vmatpush.msra.mxu0 %v195
    %197 = vmatpush.msra.mxu0 %v194
    %198 = vmatpush.msra.mxu0 %v193
    %199 = vmatpush.msra.mxu0 %v192
    %200 = vmatpush.msra.mxu0 %v191
    %201 = vmatpush.msra.mxu0 %v190
    %202 = vmatpush.msra.mxu0 %v189
    %203 = vmatpush.msra.mxu0 %v188
    %204 = vmatpush.msra.mxu0 %v187
    %205 = vmatpush.msra.mxu0 %v186
    %206 = vmatpush.msra.mxu0 %v185
    %207 = vmatpush.msra.mxu0 %v184
    %208 = vmatpush.msra.mxu0 %v183
    %209 = vmatpush.msra.mxu0 %v182
    %210 = vmatpush.msra.mxu0 %v181
    %211 = vmatpush.msra.mxu0 %v180
    %212 = vmatmul.f32.gmra.mxu0 %v117
    %v213 = vpop.f32.mrf.mxu0
    %v214 = vadd.f32 0.0, %v213
    %215 = vmatmul.f32.gmra.mxu0 %v119
    %v216 = vpop.f32.mrf.mxu0
    %v217 = vadd.f32 0.0, %v216
    %218 = vmatmul.f32.gmra.mxu0 %v121
    %v219 = vpop.f32.mrf.mxu0
    %v220 = vadd.f32 0.0, %v219
    %221 = vmatmul.f32.gmra.mxu0 %v123
    %v222 = vpop.f32.mrf.mxu0
    %v223 = vadd.f32 0.0, %v222
    %224 = vmatmul.f32.gmra.mxu0 %v125
    %v225 = vpop.f32.mrf.mxu0
    %v226 = vadd.f32 0.0, %v225
    %227 = vmatmul.f32.gmra.mxu0 %v127
    %v228 = vpop.f32.mrf.mxu0
    %v229 = vadd.f32 0.0, %v228
    %230 = vmatmul.f32.gmra.mxu0 %v129
    %v231 = vpop.f32.mrf.mxu0
    %v232 = vadd.f32 0.0, %v231
    %233 = vmatmul.f32.gmra.mxu0 %v131
    %v234 = vpop.f32.mrf.mxu0
    %v235 = vadd.f32 0.0, %v234
    %236 = vmatmul.f32.gmra.mxu0 %v133
    %v237 = vpop.f32.mrf.mxu0
    %v238 = vadd.f32 0.0, %v237
    %239 = vmatmul.f32.gmra.mxu0 %v135
    %v240 = vpop.f32.mrf.mxu0
    %v241 = vadd.f32 0.0, %v240
    %242 = vmatmul.f32.gmra.mxu0 %v137
    %v243 = vpop.f32.mrf.mxu0
    %v244 = vadd.f32 0.0, %v243
    %245 = vmatmul.f32.gmra.mxu0 %v139
    %v246 = vpop.f32.mrf.mxu0
    %v247 = vadd.f32 0.0, %v246
    %248 = vmatmul.f32.gmra.mxu0 %v141
    %v249 = vpop.f32.mrf.mxu0
    %v250 = vadd.f32 0.0, %v249
    %251 = vmatmul.f32.gmra.mxu0 %v143
    %v252 = vpop.f32.mrf.mxu0
    %v253 = vadd.f32 0.0, %v252
    %254 = vmatmul.f32.gmra.mxu0 %v145
    %v255 = vpop.f32.mrf.mxu0
    %v256 = vadd.f32 0.0, %v255
    %257 = vmatmul.f32.gmra.mxu0 %v147
    %v258 = vpop.f32.mrf.mxu0
    %v259 = vadd.f32 0.0, %v258
    %260 = vdwg.mxu0
    %v261 = vrcp.pop %v149
    %v262 = vmul.f32 %v149, %v261
    %v263 = vsub.f32 1.0, %v262
    %v264 = vmul.f32 %v261, %v263
    %v265 = vadd.f32 %v261, %v264
    %vm266 = vweird.f32 %v149
    %vm267 = vweird.f32 %v261
    %vm268 = vmor %vm266, %vm267
    %v269 = vsel %vm268, %v261, %v265
    %v270 = vand.u32 2147483647, %v149
    %vm271 = vcmp.eq.f32.partialorder %v270, 8.507059e+37
    %v272 = vand.u32 %v149, 2147483648
    %v273 = vor.u32 1.1754944e-38, %v272
    %v274 = vsel %vm271, %v273, %v269
    %v275 = vrcp.pop %v151
    %v276 = vmul.f32 %v151, %v275
    %v277 = vsub.f32 1.0, %v276
    %v278 = vmul.f32 %v275, %v277
    %v279 = vadd.f32 %v275, %v278
    %vm280 = vweird.f32 %v151
    %vm281 = vweird.f32 %v275
    %vm282 = vmor %vm280, %vm281
    %v283 = vsel %vm282, %v275, %v279
    %v284 = vand.u32 2147483647, %v151
    %vm285 = vcmp.eq.f32.partialorder %v284, 8.507059e+37
    %v286 = vand.u32 %v151, 2147483648
    %v287 = vor.u32 1.1754944e-38, %v286
    %v288 = vsel %vm285, %v287, %v283
    %v289 = vrcp.pop %v153
    %v290 = vmul.f32 %v153, %v289
    %v291 = vsub.f32 1.0, %v290
    %v292 = vmul.f32 %v289, %v291
    %v293 = vadd.f32 %v289, %v292
    %vm294 = vweird.f32 %v153
    %vm295 = vweird.f32 %v289
    %vm296 = vmor %vm294, %vm295
    %v297 = vsel %vm296, %v289, %v293
    %v298 = vand.u32 2147483647, %v153
    %vm299 = vcmp.eq.f32.partialorder %v298, 8.507059e+37
    %v300 = vand.u32 %v153, 2147483648
    %v301 = vor.u32 1.1754944e-38, %v300
    %v302 = vsel %vm299, %v301, %v297
    %v303 = vrcp.pop %v155
    %v304 = vmul.f32 %v155, %v303
    %v305 = vsub.f32 1.0, %v304
    %v306 = vmul.f32 %v303, %v305
    %v307 = vadd.f32 %v303, %v306
    %vm308 = vweird.f32 %v155
    %vm309 = vweird.f32 %v303
    %vm310 = vmor %vm308, %vm309
    %v311 = vsel %vm310, %v303, %v307
    %v312 = vand.u32 2147483647, %v155
    %vm313 = vcmp.eq.f32.partialorder %v312, 8.507059e+37
    %v314 = vand.u32 %v155, 2147483648
    %v315 = vor.u32 1.1754944e-38, %v314
    %v316 = vsel %vm313, %v315, %v311
    %v317 = vrcp.pop %v157
    %v318 = vmul.f32 %v157, %v317
    %v319 = vsub.f32 1.0, %v318
    %v320 = vmul.f32 %v317, %v319
    %v321 = vadd.f32 %v317, %v320
    %vm322 = vweird.f32 %v157
    %vm323 = vweird.f32 %v317
    %vm324 = vmor %vm322, %vm323
    %v325 = vsel %vm324, %v317, %v321
    %v326 = vand.u32 2147483647, %v157
    %vm327 = vcmp.eq.f32.partialorder %v326, 8.507059e+37
    %v328 = vand.u32 %v157, 2147483648
    %v329 = vor.u32 1.1754944e-38, %v328
    %v330 = vsel %vm327, %v329, %v325
    %v331 = vrcp.pop %v159
    %v332 = vmul.f32 %v159, %v331
    %v333 = vsub.f32 1.0, %v332
    %v334 = vmul.f32 %v331, %v333
    %v335 = vadd.f32 %v331, %v334
    %vm336 = vweird.f32 %v159
    %vm337 = vweird.f32 %v331
    %vm338 = vmor %vm336, %vm337
    %v339 = vsel %vm338, %v331, %v335
    %v340 = vand.u32 2147483647, %v159
    %vm341 = vcmp.eq.f32.partialorder %v340, 8.507059e+37
    %v342 = vand.u32 %v159, 2147483648
    %v343 = vor.u32 1.1754944e-38, %v342
    %v344 = vsel %vm341, %v343, %v339
    %v345 = vrcp.pop %v161
    %v346 = vmul.f32 %v161, %v345
    %v347 = vsub.f32 1.0, %v346
    %v348 = vmul.f32 %v345, %v347
    %v349 = vadd.f32 %v345, %v348
    %vm350 = vweird.f32 %v161
    %vm351 = vweird.f32 %v345
    %vm352 = vmor %vm350, %vm351
    %v353 = vsel %vm352, %v345, %v349
    %v354 = vand.u32 2147483647, %v161
    %vm355 = vcmp.eq.f32.partialorder %v354, 8.507059e+37
    %v356 = vand.u32 %v161, 2147483648
    %v357 = vor.u32 1.1754944e-38, %v356
    %v358 = vsel %vm355, %v357, %v353
    %v359 = vrcp.pop %v163
    %v360 = vmul.f32 %v163, %v359
    %v361 = vsub.f32 1.0, %v360
    %v362 = vmul.f32 %v359, %v361
    %v363 = vadd.f32 %v359, %v362
    %vm364 = vweird.f32 %v163
    %vm365 = vweird.f32 %v359
    %vm366 = vmor %vm364, %vm365
    %v367 = vsel %vm366, %v359, %v363
    %v368 = vand.u32 2147483647, %v163
    %vm369 = vcmp.eq.f32.partialorder %v368, 8.507059e+37
    %v370 = vand.u32 %v163, 2147483648
    %v371 = vor.u32 1.1754944e-38, %v370
    %v372 = vsel %vm369, %v371, %v367
    %v373 = vrcp.pop %v165
    %v374 = vmul.f32 %v165, %v373
    %v375 = vsub.f32 1.0, %v374
    %v376 = vmul.f32 %v373, %v375
    %v377 = vadd.f32 %v373, %v376
    %vm378 = vweird.f32 %v165
    %vm379 = vweird.f32 %v373
    %vm380 = vmor %vm378, %vm379
    %v381 = vsel %vm380, %v373, %v377
    %v382 = vand.u32 2147483647, %v165
    %vm383 = vcmp.eq.f32.partialorder %v382, 8.507059e+37
    %v384 = vand.u32 %v165, 2147483648
    %v385 = vor.u32 1.1754944e-38, %v384
    %v386 = vsel %vm383, %v385, %v381
    %v387 = vrcp.pop %v167
    %v388 = vmul.f32 %v167, %v387
    %v389 = vsub.f32 1.0, %v388
    %v390 = vmul.f32 %v387, %v389
    %v391 = vadd.f32 %v387, %v390
    %vm392 = vweird.f32 %v167
    %vm393 = vweird.f32 %v387
    %vm394 = vmor %vm392, %vm393
    %v395 = vsel %vm394, %v387, %v391
    %v396 = vand.u32 2147483647, %v167
    %vm397 = vcmp.eq.f32.partialorder %v396, 8.507059e+37
    %v398 = vand.u32 %v167, 2147483648
    %v399 = vor.u32 1.1754944e-38, %v398
    %v400 = vsel %vm397, %v399, %v395
    %v401 = vrcp.pop %v169
    %v402 = vmul.f32 %v169, %v401
    %v403 = vsub.f32 1.0, %v402
    %v404 = vmul.f32 %v401, %v403
    %v405 = vadd.f32 %v401, %v404
    %vm406 = vweird.f32 %v169
    %vm407 = vweird.f32 %v401
    %vm408 = vmor %vm406, %vm407
    %v409 = vsel %vm408, %v401, %v405
    %v410 = vand.u32 2147483647, %v169
    %vm411 = vcmp.eq.f32.partialorder %v410, 8.507059e+37
    %v412 = vand.u32 %v169, 2147483648
    %v413 = vor.u32 1.1754944e-38, %v412
    %v414 = vsel %vm411, %v413, %v409
    %v415 = vrcp.pop %v171
    %v416 = vmul.f32 %v171, %v415
    %v417 = vsub.f32 1.0, %v416
    %v418 = vmul.f32 %v415, %v417
    %v419 = vadd.f32 %v415, %v418
    %vm420 = vweird.f32 %v171
    %vm421 = vweird.f32 %v415
    %vm422 = vmor %vm420, %vm421
    %v423 = vsel %vm422, %v415, %v419
    %v424 = vand.u32 2147483647, %v171
    %vm425 = vcmp.eq.f32.partialorder %v424, 8.507059e+37
    %v426 = vand.u32 %v171, 2147483648
    %v427 = vor.u32 1.1754944e-38, %v426
    %v428 = vsel %vm425, %v427, %v423
    %v429 = vrcp.pop %v173
    %v430 = vmul.f32 %v173, %v429
    %v431 = vsub.f32 1.0, %v430
    %v432 = vmul.f32 %v429, %v431
    %v433 = vadd.f32 %v429, %v432
    %vm434 = vweird.f32 %v173
    %vm435 = vweird.f32 %v429
    %vm436 = vmor %vm434, %vm435
    %v437 = vsel %vm436, %v429, %v433
    %v438 = vand.u32 2147483647, %v173
    %vm439 = vcmp.eq.f32.partialorder %v438, 8.507059e+37
    %v440 = vand.u32 %v173, 2147483648
    %v441 = vor.u32 1.1754944e-38, %v440
    %v442 = vsel %vm439, %v441, %v437
    %v443 = vrcp.pop %v175
    %v444 = vmul.f32 %v175, %v443
    %v445 = vsub.f32 1.0, %v444
    %v446 = vmul.f32 %v443, %v445
    %v447 = vadd.f32 %v443, %v446
    %vm448 = vweird.f32 %v175
    %vm449 = vweird.f32 %v443
    %vm450 = vmor %vm448, %vm449
    %v451 = vsel %vm450, %v443, %v447
    %v452 = vand.u32 2147483647, %v175
    %vm453 = vcmp.eq.f32.partialorder %v452, 8.507059e+37
    %v454 = vand.u32 %v175, 2147483648
    %v455 = vor.u32 1.1754944e-38, %v454
    %v456 = vsel %vm453, %v455, %v451
    %v457 = vrcp.pop %v177
    %v458 = vmul.f32 %v177, %v457
    %v459 = vsub.f32 1.0, %v458
    %v460 = vmul.f32 %v457, %v459
    %v461 = vadd.f32 %v457, %v460
    %vm462 = vweird.f32 %v177
    %vm463 = vweird.f32 %v457
    %vm464 = vmor %vm462, %vm463
    %v465 = vsel %vm464, %v457, %v461
    %v466 = vand.u32 2147483647, %v177
    %vm467 = vcmp.eq.f32.partialorder %v466, 8.507059e+37
    %v468 = vand.u32 %v177, 2147483648
    %v469 = vor.u32 1.1754944e-38, %v468
    %v470 = vsel %vm467, %v469, %v465
    %v471 = vrcp.pop %v179
    %v472 = vmul.f32 %v179, %v471
    %v473 = vsub.f32 1.0, %v472
    %v474 = vmul.f32 %v471, %v473
    %v475 = vadd.f32 %v471, %v474
    %vm476 = vweird.f32 %v179
    %vm477 = vweird.f32 %v471
    %vm478 = vmor %vm476, %vm477
    %v479 = vsel %vm478, %v471, %v475
    %v480 = vand.u32 2147483647, %v179
    %vm481 = vcmp.eq.f32.partialorder %v480, 8.507059e+37
    %v482 = vand.u32 %v179, 2147483648
    %v483 = vor.u32 1.1754944e-38, %v482
    %v484 = vsel %vm481, %v483, %v479
    %v485 = vmul.f32 %v214, %v274
    %v486 = vmul.f32 %v217, %v288
    %v487 = vmul.f32 %v220, %v302
    %v488 = vmul.f32 %v223, %v316
    %v489 = vmul.f32 %v226, %v330
    %v490 = vmul.f32 %v229, %v344
    %v491 = vmul.f32 %v232, %v358
    %v492 = vmul.f32 %v235, %v372
    %v493 = vmul.f32 %v238, %v386
    %v494 = vmul.f32 %v241, %v400
    %v495 = vmul.f32 %v244, %v414
    %v496 = vmul.f32 %v247, %v428
    %v497 = vmul.f32 %v250, %v442
    %v498 = vmul.f32 %v253, %v456
    %v499 = vmul.f32 %v256, %v470
    %v500 = vmul.f32 %v259, %v484
    %502 = vset.pattern.permute.xlu0 0
    %503 = vperm.xlu0 %502, %v52
    %v504 = vpop.permute.xlu0 %503
    %507 = vset.pattern.permute.xlu0 0
    %508 = vperm.xlu0 %507, %v53
    %v509 = vpop.permute.xlu0 %508
    %512 = vset.pattern.permute.xlu0 0
    %513 = vperm.xlu0 %512, %v54
    %v514 = vpop.permute.xlu0 %513
    %517 = vset.pattern.permute.xlu0 0
    %518 = vperm.xlu0 %517, %v55
    %v519 = vpop.permute.xlu0 %518
    %522 = vset.pattern.permute.xlu0 0
    %523 = vperm.xlu0 %522, %v56
    %v524 = vpop.permute.xlu0 %523
    %527 = vset.pattern.permute.xlu0 0
    %528 = vperm.xlu0 %527, %v57
    %v529 = vpop.permute.xlu0 %528
    %532 = vset.pattern.permute.xlu0 0
    %533 = vperm.xlu0 %532, %v58
    %v534 = vpop.permute.xlu0 %533
    %537 = vset.pattern.permute.xlu0 0
    %538 = vperm.xlu0 %537, %v59
    %v539 = vpop.permute.xlu0 %538
    %542 = vset.pattern.permute.xlu0 0
    %543 = vperm.xlu0 %542, %v60
    %v544 = vpop.permute.xlu0 %543
    %547 = vset.pattern.permute.xlu0 0
    %548 = vperm.xlu0 %547, %v61
    %v549 = vpop.permute.xlu0 %548
    %552 = vset.pattern.permute.xlu0 0
    %553 = vperm.xlu0 %552, %v62
    %v554 = vpop.permute.xlu0 %553
    %557 = vset.pattern.permute.xlu0 0
    %558 = vperm.xlu0 %557, %v63
    %v559 = vpop.permute.xlu0 %558
    %562 = vset.pattern.permute.xlu0 0
    %563 = vperm.xlu0 %562, %v64
    %v564 = vpop.permute.xlu0 %563
    %567 = vset.pattern.permute.xlu0 0
    %568 = vperm.xlu0 %567, %v65
    %v569 = vpop.permute.xlu0 %568
    %572 = vset.pattern.permute.xlu0 0
    %573 = vperm.xlu0 %572, %v66
    %v574 = vpop.permute.xlu0 %573
    %577 = vset.pattern.permute.xlu0 0
    %578 = vperm.xlu0 %577, %v67
    %v579 = vpop.permute.xlu0 %578
    %v581 = vperm.slane %v34, 0
    %v582 = vsub.f32 %v504, %v581
    %v583 = vsub.f32 %v509, %v581
    %v584 = vsub.f32 %v514, %v581
    %v585 = vsub.f32 %v519, %v581
    %v586 = vsub.f32 %v524, %v581
    %v587 = vsub.f32 %v529, %v581
    %v588 = vsub.f32 %v534, %v581
    %v589 = vsub.f32 %v539, %v581
    %v590 = vsub.f32 %v544, %v581
    %v591 = vsub.f32 %v549, %v581
    %v592 = vsub.f32 %v554, %v581
    %v593 = vsub.f32 %v559, %v581
    %v594 = vsub.f32 %v564, %v581
    %v595 = vsub.f32 %v569, %v581
    %v596 = vsub.f32 %v574, %v581
    %v597 = vsub.f32 %v579, %v581
    %v598 = vand.u32 2147483647, %v582
    %v599 = vand.u32 2147483647, %v583
    %v600 = vand.u32 2147483647, %v584
    %v601 = vand.u32 2147483647, %v585
    %v602 = vand.u32 2147483647, %v586
    %v603 = vand.u32 2147483647, %v587
    %v604 = vand.u32 2147483647, %v588
    %v605 = vand.u32 2147483647, %v589
    %v606 = vand.u32 2147483647, %v590
    %v607 = vand.u32 2147483647, %v591
    %v608 = vand.u32 2147483647, %v592
    %v609 = vand.u32 2147483647, %v593
    %v610 = vand.u32 2147483647, %v594
    %v611 = vand.u32 2147483647, %v595
    %v612 = vand.u32 2147483647, %v596
    %v613 = vand.u32 2147483647, %v597
    %614 = vset.pattern.permute.xlu0 1
    %615 = vperm.xlu0 %614, %v52
    %v616 = vpop.permute.xlu0 %615
    %618 = vset.pattern.permute.xlu0 1
    %619 = vperm.xlu0 %618, %v53
    %v620 = vpop.permute.xlu0 %619
    %622 = vset.pattern.permute.xlu0 1
    %623 = vperm.xlu0 %622, %v54
    %v624 = vpop.permute.xlu0 %623
    %626 = vset.pattern.permute.xlu0 1
    %627 = vperm.xlu0 %626, %v55
    %v628 = vpop.permute.xlu0 %627
    %630 = vset.pattern.permute.xlu0 1
    %631 = vperm.xlu0 %630, %v56
    %v632 = vpop.permute.xlu0 %631
    %634 = vset.pattern.permute.xlu0 1
    %635 = vperm.xlu0 %634, %v57
    %v636 = vpop.permute.xlu0 %635
    %638 = vset.pattern.permute.xlu0 1
    %639 = vperm.xlu0 %638, %v58
    %v640 = vpop.permute.xlu0 %639
    %642 = vset.pattern.permute.xlu0 1
    %643 = vperm.xlu0 %642, %v59
    %v644 = vpop.permute.xlu0 %643
    %646 = vset.pattern.permute.xlu0 1
    %647 = vperm.xlu0 %646, %v60
    %v648 = vpop.permute.xlu0 %647
    %650 = vset.pattern.permute.xlu0 1
    %651 = vperm.xlu0 %650, %v61
    %v652 = vpop.permute.xlu0 %651
    %654 = vset.pattern.permute.xlu0 1
    %655 = vperm.xlu0 %654, %v62
    %v656 = vpop.permute.xlu0 %655
    %658 = vset.pattern.permute.xlu0 1
    %659 = vperm.xlu0 %658, %v63
    %v660 = vpop.permute.xlu0 %659
    %662 = vset.pattern.permute.xlu0 1
    %663 = vperm.xlu0 %662, %v64
    %v664 = vpop.permute.xlu0 %663
    %666 = vset.pattern.permute.xlu0 1
    %667 = vperm.xlu0 %666, %v65
    %v668 = vpop.permute.xlu0 %667
    %670 = vset.pattern.permute.xlu0 1
    %671 = vperm.xlu0 %670, %v66
    %v672 = vpop.permute.xlu0 %671
    %674 = vset.pattern.permute.xlu0 1
    %675 = vperm.xlu0 %674, %v67
    %v676 = vpop.permute.xlu0 %675
    %v678 = vperm.slane %v34, 1
    %v679 = vsub.f32 %v616, %v678
    %v680 = vsub.f32 %v620, %v678
    %v681 = vsub.f32 %v624, %v678
    %v682 = vsub.f32 %v628, %v678
    %v683 = vsub.f32 %v632, %v678
    %v684 = vsub.f32 %v636, %v678
    %v685 = vsub.f32 %v640, %v678
    %v686 = vsub.f32 %v644, %v678
    %v687 = vsub.f32 %v648, %v678
    %v688 = vsub.f32 %v652, %v678
    %v689 = vsub.f32 %v656, %v678
    %v690 = vsub.f32 %v660, %v678
    %v691 = vsub.f32 %v664, %v678
    %v692 = vsub.f32 %v668, %v678
    %v693 = vsub.f32 %v672, %v678
    %v694 = vsub.f32 %v676, %v678
    %v695 = vand.u32 2147483647, %v679
    %v696 = vand.u32 2147483647, %v680
    %v697 = vand.u32 2147483647, %v681
    %v698 = vand.u32 2147483647, %v682
    %v699 = vand.u32 2147483647, %v683
    %v700 = vand.u32 2147483647, %v684
    %v701 = vand.u32 2147483647, %v685
    %v702 = vand.u32 2147483647, %v686
    %v703 = vand.u32 2147483647, %v687
    %v704 = vand.u32 2147483647, %v688
    %v705 = vand.u32 2147483647, %v689
    %v706 = vand.u32 2147483647, %v690
    %v707 = vand.u32 2147483647, %v691
    %v708 = vand.u32 2147483647, %v692
    %v709 = vand.u32 2147483647, %v693
    %v710 = vand.u32 2147483647, %v694
    %v711 = vadd.f32 %v598, %v695
    %v712 = vadd.f32 %v599, %v696
    %v713 = vadd.f32 %v600, %v697
    %v714 = vadd.f32 %v601, %v698
    %v715 = vadd.f32 %v602, %v699
    %v716 = vadd.f32 %v603, %v700
    %v717 = vadd.f32 %v604, %v701
    %v718 = vadd.f32 %v605, %v702
    %v719 = vadd.f32 %v606, %v703
    %v720 = vadd.f32 %v607, %v704
    %v721 = vadd.f32 %v608, %v705
    %v722 = vadd.f32 %v609, %v706
    %v723 = vadd.f32 %v610, %v707
    %v724 = vadd.f32 %v611, %v708
    %v725 = vadd.f32 %v612, %v709
    %v726 = vadd.f32 %v613, %v710
    %727 = vset.pattern.permute.xlu0 2
    %728 = vperm.xlu0 %727, %v52
    %v729 = vpop.permute.xlu0 %728
    %731 = vset.pattern.permute.xlu0 2
    %732 = vperm.xlu0 %731, %v53
    %v733 = vpop.permute.xlu0 %732
    %735 = vset.pattern.permute.xlu0 2
    %736 = vperm.xlu0 %735, %v54
    %v737 = vpop.permute.xlu0 %736
    %739 = vset.pattern.permute.xlu0 2
    %740 = vperm.xlu0 %739, %v55
    %v741 = vpop.permute.xlu0 %740
    %743 = vset.pattern.permute.xlu0 2
    %744 = vperm.xlu0 %743, %v56
    %v745 = vpop.permute.xlu0 %744
    %747 = vset.pattern.permute.xlu0 2
    %748 = vperm.xlu0 %747, %v57
    %v749 = vpop.permute.xlu0 %748
    %751 = vset.pattern.permute.xlu0 2
    %752 = vperm.xlu0 %751, %v58
    %v753 = vpop.permute.xlu0 %752
    %755 = vset.pattern.permute.xlu0 2
    %756 = vperm.xlu0 %755, %v59
    %v757 = vpop.permute.xlu0 %756
    %759 = vset.pattern.permute.xlu0 2
    %760 = vperm.xlu0 %759, %v60
    %v761 = vpop.permute.xlu0 %760
    %763 = vset.pattern.permute.xlu0 2
    %764 = vperm.xlu0 %763, %v61
    %v765 = vpop.permute.xlu0 %764
    %767 = vset.pattern.permute.xlu0 2
    %768 = vperm.xlu0 %767, %v62
    %v769 = vpop.permute.xlu0 %768
    %771 = vset.pattern.permute.xlu0 2
    %772 = vperm.xlu0 %771, %v63
    %v773 = vpop.permute.xlu0 %772
    %775 = vset.pattern.permute.xlu0 2
    %776 = vperm.xlu0 %775, %v64
    %v777 = vpop.permute.xlu0 %776
    %779 = vset.pattern.permute.xlu0 2
    %780 = vperm.xlu0 %779, %v65
    %v781 = vpop.permute.xlu0 %780
    %783 = vset.pattern.permute.xlu0 2
    %784 = vperm.xlu0 %783, %v66
    %v785 = vpop.permute.xlu0 %784
    %787 = vset.pattern.permute.xlu0 2
    %788 = vperm.xlu0 %787, %v67
    %v789 = vpop.permute.xlu0 %788
    %v791 = vperm.slane %v34, 2
    %v792 = vsub.f32 %v729, %v791
    %v793 = vsub.f32 %v733, %v791
    %v794 = vsub.f32 %v737, %v791
    %v795 = vsub.f32 %v741, %v791
    %v796 = vsub.f32 %v745, %v791
    %v797 = vsub.f32 %v749, %v791
    %v798 = vsub.f32 %v753, %v791
    %v799 = vsub.f32 %v757, %v791
    %v800 = vsub.f32 %v761, %v791
    %v801 = vsub.f32 %v765, %v791
    %v802 = vsub.f32 %v769, %v791
    %v803 = vsub.f32 %v773, %v791
    %v804 = vsub.f32 %v777, %v791
    %v805 = vsub.f32 %v781, %v791
    %v806 = vsub.f32 %v785, %v791
    %v807 = vsub.f32 %v789, %v791
    %v808 = vand.u32 2147483647, %v792
    %v809 = vand.u32 2147483647, %v793
    %v810 = vand.u32 2147483647, %v794
    %v811 = vand.u32 2147483647, %v795
    %v812 = vand.u32 2147483647, %v796
    %v813 = vand.u32 2147483647, %v797
    %v814 = vand.u32 2147483647, %v798
    %v815 = vand.u32 2147483647, %v799
    %v816 = vand.u32 2147483647, %v800
    %v817 = vand.u32 2147483647, %v801
    %v818 = vand.u32 2147483647, %v802
    %v819 = vand.u32 2147483647, %v803
    %v820 = vand.u32 2147483647, %v804
    %v821 = vand.u32 2147483647, %v805
    %v822 = vand.u32 2147483647, %v806
    %v823 = vand.u32 2147483647, %v807
    %v824 = vadd.f32 %v711, %v808
    %v825 = vadd.f32 %v712, %v809
    %v826 = vadd.f32 %v713, %v810
    %v827 = vadd.f32 %v714, %v811
    %v828 = vadd.f32 %v715, %v812
    %v829 = vadd.f32 %v716, %v813
    %v830 = vadd.f32 %v717, %v814
    %v831 = vadd.f32 %v718, %v815
    %v832 = vadd.f32 %v719, %v816
    %v833 = vadd.f32 %v720, %v817
    %v834 = vadd.f32 %v721, %v818
    %v835 = vadd.f32 %v722, %v819
    %v836 = vadd.f32 %v723, %v820
    %v837 = vadd.f32 %v724, %v821
    %v838 = vadd.f32 %v725, %v822
    %v839 = vadd.f32 %v726, %v823
    %840 = vset.pattern.permute.xlu0 3
    %841 = vperm.xlu0 %840, %v52
    %v842 = vpop.permute.xlu0 %841
    %844 = vset.pattern.permute.xlu0 3
    %845 = vperm.xlu0 %844, %v53
    %v846 = vpop.permute.xlu0 %845
    %848 = vset.pattern.permute.xlu0 3
    %849 = vperm.xlu0 %848, %v54
    %v850 = vpop.permute.xlu0 %849
    %852 = vset.pattern.permute.xlu0 3
    %853 = vperm.xlu0 %852, %v55
    %v854 = vpop.permute.xlu0 %853
    %856 = vset.pattern.permute.xlu0 3
    %857 = vperm.xlu0 %856, %v56
    %v858 = vpop.permute.xlu0 %857
    %860 = vset.pattern.permute.xlu0 3
    %861 = vperm.xlu0 %860, %v57
    %v862 = vpop.permute.xlu0 %861
    %864 = vset.pattern.permute.xlu0 3
    %865 = vperm.xlu0 %864, %v58
    %v866 = vpop.permute.xlu0 %865
    %868 = vset.pattern.permute.xlu0 3
    %869 = vperm.xlu0 %868, %v59
    %v870 = vpop.permute.xlu0 %869
    %872 = vset.pattern.permute.xlu0 3
    %873 = vperm.xlu0 %872, %v60
    %v874 = vpop.permute.xlu0 %873
    %876 = vset.pattern.permute.xlu0 3
    %877 = vperm.xlu0 %876, %v61
    %v878 = vpop.permute.xlu0 %877
    %880 = vset.pattern.permute.xlu0 3
    %881 = vperm.xlu0 %880, %v62
    %v882 = vpop.permute.xlu0 %881
    %884 = vset.pattern.permute.xlu0 3
    %885 = vperm.xlu0 %884, %v63
    %v886 = vpop.permute.xlu0 %885
    %888 = vset.pattern.permute.xlu0 3
    %889 = vperm.xlu0 %888, %v64
    %v890 = vpop.permute.xlu0 %889
    %892 = vset.pattern.permute.xlu0 3
    %893 = vperm.xlu0 %892, %v65
    %v894 = vpop.permute.xlu0 %893
    %896 = vset.pattern.permute.xlu0 3
    %897 = vperm.xlu0 %896, %v66
    %v898 = vpop.permute.xlu0 %897
    %900 = vset.pattern.permute.xlu0 3
    %901 = vperm.xlu0 %900, %v67
    %v902 = vpop.permute.xlu0 %901
    %v904 = vperm.slane %v34, 3
    %v905 = vsub.f32 %v842, %v904
    %v906 = vsub.f32 %v846, %v904
    %v907 = vsub.f32 %v850, %v904
    %v908 = vsub.f32 %v854, %v904
    %v909 = vsub.f32 %v858, %v904
    %v910 = vsub.f32 %v862, %v904
    %v911 = vsub.f32 %v866, %v904
    %v912 = vsub.f32 %v870, %v904
    %v913 = vsub.f32 %v874, %v904
    %v914 = vsub.f32 %v878, %v904
    %v915 = vsub.f32 %v882, %v904
    %v916 = vsub.f32 %v886, %v904
    %v917 = vsub.f32 %v890, %v904
    %v918 = vsub.f32 %v894, %v904
    %v919 = vsub.f32 %v898, %v904
    %v920 = vsub.f32 %v902, %v904
    %v921 = vand.u32 2147483647, %v905
    %v922 = vand.u32 2147483647, %v906
    %v923 = vand.u32 2147483647, %v907
    %v924 = vand.u32 2147483647, %v908
    %v925 = vand.u32 2147483647, %v909
    %v926 = vand.u32 2147483647, %v910
    %v927 = vand.u32 2147483647, %v911
    %v928 = vand.u32 2147483647, %v912
    %v929 = vand.u32 2147483647, %v913
    %v930 = vand.u32 2147483647, %v914
    %v931 = vand.u32 2147483647, %v915
    %v932 = vand.u32 2147483647, %v916
    %v933 = vand.u32 2147483647, %v917
    %v934 = vand.u32 2147483647, %v918
    %v935 = vand.u32 2147483647, %v919
    %v936 = vand.u32 2147483647, %v920
    %v937 = vadd.f32 %v824, %v921
    %v938 = vadd.f32 %v825, %v922
    %v939 = vadd.f32 %v826, %v923
    %v940 = vadd.f32 %v827, %v924
    %v941 = vadd.f32 %v828, %v925
    %v942 = vadd.f32 %v829, %v926
    %v943 = vadd.f32 %v830, %v927
    %v944 = vadd.f32 %v831, %v928
    %v945 = vadd.f32 %v832, %v929
    %v946 = vadd.f32 %v833, %v930
    %v947 = vadd.f32 %v834, %v931
    %v948 = vadd.f32 %v835, %v932
    %v949 = vadd.f32 %v836, %v933
    %v950 = vadd.f32 %v837, %v934
    %v951 = vadd.f32 %v838, %v935
    %v952 = vadd.f32 %v839, %v936
    %953 = vset.pattern.permute.xlu0 6
    %954 = vperm.xlu0 %953, %v52
    %v955 = vpop.permute.xlu0 %954
    %957 = vset.pattern.permute.xlu0 6
    %958 = vperm.xlu0 %957, %v53
    %v959 = vpop.permute.xlu0 %958
    %961 = vset.pattern.permute.xlu0 6
    %962 = vperm.xlu0 %961, %v54
    %v963 = vpop.permute.xlu0 %962
    %965 = vset.pattern.permute.xlu0 6
    %966 = vperm.xlu0 %965, %v55
    %v967 = vpop.permute.xlu0 %966
    %969 = vset.pattern.permute.xlu0 6
    %970 = vperm.xlu0 %969, %v56
    %v971 = vpop.permute.xlu0 %970
    %973 = vset.pattern.permute.xlu0 6
    %974 = vperm.xlu0 %973, %v57
    %v975 = vpop.permute.xlu0 %974
    %977 = vset.pattern.permute.xlu0 6
    %978 = vperm.xlu0 %977, %v58
    %v979 = vpop.permute.xlu0 %978
    %981 = vset.pattern.permute.xlu0 6
    %982 = vperm.xlu0 %981, %v59
    %v983 = vpop.permute.xlu0 %982
    %985 = vset.pattern.permute.xlu0 6
    %986 = vperm.xlu0 %985, %v60
    %v987 = vpop.permute.xlu0 %986
    %989 = vset.pattern.permute.xlu0 6
    %990 = vperm.xlu0 %989, %v61
    %v991 = vpop.permute.xlu0 %990
    %993 = vset.pattern.permute.xlu0 6
    %994 = vperm.xlu0 %993, %v62
    %v995 = vpop.permute.xlu0 %994
    %997 = vset.pattern.permute.xlu0 6
    %998 = vperm.xlu0 %997, %v63
    %v999 = vpop.permute.xlu0 %998
    %1001 = vset.pattern.permute.xlu0 6
    %1002 = vperm.xlu0 %1001, %v64
    %v1003 = vpop.permute.xlu0 %1002
    %1005 = vset.pattern.permute.xlu0 6
    %1006 = vperm.xlu0 %1005, %v65
    %v1007 = vpop.permute.xlu0 %1006
    %1009 = vset.pattern.permute.xlu0 6
    %1010 = vperm.xlu0 %1009, %v66
    %v1011 = vpop.permute.xlu0 %1010
    %1013 = vset.pattern.permute.xlu0 6
    %1014 = vperm.xlu0 %1013, %v67
    %v1015 = vpop.permute.xlu0 %1014
    %v1017 = vperm.slane %v34, 6
    %v1018 = vmin.f32 %v955, %v1017
    %v1019 = vmin.f32 %v959, %v1017
    %v1020 = vmin.f32 %v963, %v1017
    %v1021 = vmin.f32 %v967, %v1017
    %v1022 = vmin.f32 %v971, %v1017
    %v1023 = vmin.f32 %v975, %v1017
    %v1024 = vmin.f32 %v979, %v1017
    %v1025 = vmin.f32 %v983, %v1017
    %v1026 = vmin.f32 %v987, %v1017
    %v1027 = vmin.f32 %v991, %v1017
    %v1028 = vmin.f32 %v995, %v1017
    %v1029 = vmin.f32 %v999, %v1017
    %v1030 = vmin.f32 %v1003, %v1017
    %v1031 = vmin.f32 %v1007, %v1017
    %v1032 = vmin.f32 %v1011, %v1017
    %v1033 = vmin.f32 %v1015, %v1017
    %1034 = vset.pattern.permute.xlu0 4
    %1035 = vperm.xlu0 %1034, %v52
    %v1036 = vpop.permute.xlu0 %1035
    %1038 = vset.pattern.permute.xlu0 4
    %1039 = vperm.xlu0 %1038, %v53
    %v1040 = vpop.permute.xlu0 %1039
    %1042 = vset.pattern.permute.xlu0 4
    %1043 = vperm.xlu0 %1042, %v54
    %v1044 = vpop.permute.xlu0 %1043
    %1046 = vset.pattern.permute.xlu0 4
    %1047 = vperm.xlu0 %1046, %v55
    %v1048 = vpop.permute.xlu0 %1047
    %1050 = vset.pattern.permute.xlu0 4
    %1051 = vperm.xlu0 %1050, %v56
    %v1052 = vpop.permute.xlu0 %1051
    %1054 = vset.pattern.permute.xlu0 4
    %1055 = vperm.xlu0 %1054, %v57
    %v1056 = vpop.permute.xlu0 %1055
    %1058 = vset.pattern.permute.xlu0 4
    %1059 = vperm.xlu0 %1058, %v58
    %v1060 = vpop.permute.xlu0 %1059
    %1062 = vset.pattern.permute.xlu0 4
    %1063 = vperm.xlu0 %1062, %v59
    %v1064 = vpop.permute.xlu0 %1063
    %1066 = vset.pattern.permute.xlu0 4
    %1067 = vperm.xlu0 %1066, %v60
    %v1068 = vpop.permute.xlu0 %1067
    %1070 = vset.pattern.permute.xlu0 4
    %1071 = vperm.xlu0 %1070, %v61
    %v1072 = vpop.permute.xlu0 %1071
    %1074 = vset.pattern.permute.xlu0 4
    %1075 = vperm.xlu0 %1074, %v62
    %v1076 = vpop.permute.xlu0 %1075
    %1078 = vset.pattern.permute.xlu0 4
    %1079 = vperm.xlu0 %1078, %v63
    %v1080 = vpop.permute.xlu0 %1079
    %1082 = vset.pattern.permute.xlu0 4
    %1083 = vperm.xlu0 %1082, %v64
    %v1084 = vpop.permute.xlu0 %1083
    %1086 = vset.pattern.permute.xlu0 4
    %1087 = vperm.xlu0 %1086, %v65
    %v1088 = vpop.permute.xlu0 %1087
    %1090 = vset.pattern.permute.xlu0 4
    %1091 = vperm.xlu0 %1090, %v66
    %v1092 = vpop.permute.xlu0 %1091
    %1094 = vset.pattern.permute.xlu0 4
    %1095 = vperm.xlu0 %1094, %v67
    %v1096 = vpop.permute.xlu0 %1095
    %v1098 = vperm.slane %v34, 4
    %v1099 = vmax.f32 %v1036, %v1098
    %v1100 = vmax.f32 %v1040, %v1098
    %v1101 = vmax.f32 %v1044, %v1098
    %v1102 = vmax.f32 %v1048, %v1098
    %v1103 = vmax.f32 %v1052, %v1098
    %v1104 = vmax.f32 %v1056, %v1098
    %v1105 = vmax.f32 %v1060, %v1098
    %v1106 = vmax.f32 %v1064, %v1098
    %v1107 = vmax.f32 %v1068, %v1098
    %v1108 = vmax.f32 %v1072, %v1098
    %v1109 = vmax.f32 %v1076, %v1098
    %v1110 = vmax.f32 %v1080, %v1098
    %v1111 = vmax.f32 %v1084, %v1098
    %v1112 = vmax.f32 %v1088, %v1098
    %v1113 = vmax.f32 %v1092, %v1098
    %v1114 = vmax.f32 %v1096, %v1098
    %v1115 = vsub.f32 %v1018, %v1099
    %v1116 = vsub.f32 %v1019, %v1100
    %v1117 = vsub.f32 %v1020, %v1101
    %v1118 = vsub.f32 %v1021, %v1102
    %v1119 = vsub.f32 %v1022, %v1103
    %v1120 = vsub.f32 %v1023, %v1104
    %v1121 = vsub.f32 %v1024, %v1105
    %v1122 = vsub.f32 %v1025, %v1106
    %v1123 = vsub.f32 %v1026, %v1107
    %v1124 = vsub.f32 %v1027, %v1108
    %v1125 = vsub.f32 %v1028, %v1109
    %v1126 = vsub.f32 %v1029, %v1110
    %v1127 = vsub.f32 %v1030, %v1111
    %v1128 = vsub.f32 %v1031, %v1112
    %v1129 = vsub.f32 %v1032, %v1113
    %v1130 = vsub.f32 %v1033, %v1114
    %1131 = vset.pattern.permute.xlu0 7
    %1132 = vperm.xlu0 %1131, %v52
    %v1133 = vpop.permute.xlu0 %1132
    %1135 = vset.pattern.permute.xlu0 7
    %1136 = vperm.xlu0 %1135, %v53
    %v1137 = vpop.permute.xlu0 %1136
    %1139 = vset.pattern.permute.xlu0 7
    %1140 = vperm.xlu0 %1139, %v54
    %v1141 = vpop.permute.xlu0 %1140
    %1143 = vset.pattern.permute.xlu0 7
    %1144 = vperm.xlu0 %1143, %v55
    %v1145 = vpop.permute.xlu0 %1144
    %1147 = vset.pattern.permute.xlu0 7
    %1148 = vperm.xlu0 %1147, %v56
    %v1149 = vpop.permute.xlu0 %1148
    %1151 = vset.pattern.permute.xlu0 7
    %1152 = vperm.xlu0 %1151, %v57
    %v1153 = vpop.permute.xlu0 %1152
    %1155 = vset.pattern.permute.xlu0 7
    %1156 = vperm.xlu0 %1155, %v58
    %v1157 = vpop.permute.xlu0 %1156
    %1159 = vset.pattern.permute.xlu0 7
    %1160 = vperm.xlu0 %1159, %v59
    %v1161 = vpop.permute.xlu0 %1160
    %1163 = vset.pattern.permute.xlu0 7
    %1164 = vperm.xlu0 %1163, %v60
    %v1165 = vpop.permute.xlu0 %1164
    %1167 = vset.pattern.permute.xlu0 7
    %1168 = vperm.xlu0 %1167, %v61
    %v1169 = vpop.permute.xlu0 %1168
    %1171 = vset.pattern.permute.xlu0 7
    %1172 = vperm.xlu0 %1171, %v62
    %v1173 = vpop.permute.xlu0 %1172
    %1175 = vset.pattern.permute.xlu0 7
    %1176 = vperm.xlu0 %1175, %v63
    %v1177 = vpop.permute.xlu0 %1176
    %1179 = vset.pattern.permute.xlu0 7
    %1180 = vperm.xlu0 %1179, %v64
    %v1181 = vpop.permute.xlu0 %1180
    %1183 = vset.pattern.permute.xlu0 7
    %1184 = vperm.xlu0 %1183, %v65
    %v1185 = vpop.permute.xlu0 %1184
    %1187 = vset.pattern.permute.xlu0 7
    %1188 = vperm.xlu0 %1187, %v66
    %v1189 = vpop.permute.xlu0 %1188
    %1191 = vset.pattern.permute.xlu0 7
    %1192 = vperm.xlu0 %1191, %v67
    %v1193 = vpop.permute.xlu0 %1192
    %v1195 = vperm.slane %v34, 7
    %v1196 = vmin.f32 %v1133, %v1195
    %v1197 = vmin.f32 %v1137, %v1195
    %v1198 = vmin.f32 %v1141, %v1195
    %v1199 = vmin.f32 %v1145, %v1195
    %v1200 = vmin.f32 %v1149, %v1195
    %v1201 = vmin.f32 %v1153, %v1195
    %v1202 = vmin.f32 %v1157, %v1195
    %v1203 = vmin.f32 %v1161, %v1195
    %v1204 = vmin.f32 %v1165, %v1195
    %v1205 = vmin.f32 %v1169, %v1195
    %v1206 = vmin.f32 %v1173, %v1195
    %v1207 = vmin.f32 %v1177, %v1195
    %v1208 = vmin.f32 %v1181, %v1195
    %v1209 = vmin.f32 %v1185, %v1195
    %v1210 = vmin.f32 %v1189, %v1195
    %v1211 = vmin.f32 %v1193, %v1195
    %1212 = vset.pattern.permute.xlu0 5
    %1213 = vperm.xlu0 %1212, %v52
    %v1214 = vpop.permute.xlu0 %1213
    %1216 = vset.pattern.permute.xlu0 5
    %1217 = vperm.xlu0 %1216, %v53
    %v1218 = vpop.permute.xlu0 %1217
    %1220 = vset.pattern.permute.xlu0 5
    %1221 = vperm.xlu0 %1220, %v54
    %v1222 = vpop.permute.xlu0 %1221
    %1224 = vset.pattern.permute.xlu0 5
    %1225 = vperm.xlu0 %1224, %v55
    %v1226 = vpop.permute.xlu0 %1225
    %1228 = vset.pattern.permute.xlu0 5
    %1229 = vperm.xlu0 %1228, %v56
    %v1230 = vpop.permute.xlu0 %1229
    %1232 = vset.pattern.permute.xlu0 5
    %1233 = vperm.xlu0 %1232, %v57
    %v1234 = vpop.permute.xlu0 %1233
    %1236 = vset.pattern.permute.xlu0 5
    %1237 = vperm.xlu0 %1236, %v58
    %v1238 = vpop.permute.xlu0 %1237
    %1240 = vset.pattern.permute.xlu0 5
    %1241 = vperm.xlu0 %1240, %v59
    %v1242 = vpop.permute.xlu0 %1241
    %1244 = vset.pattern.permute.xlu0 5
    %1245 = vperm.xlu0 %1244, %v60
    %v1246 = vpop.permute.xlu0 %1245
    %1248 = vset.pattern.permute.xlu0 5
    %1249 = vperm.xlu0 %1248, %v61
    %v1250 = vpop.permute.xlu0 %1249
    %1252 = vset.pattern.permute.xlu0 5
    %1253 = vperm.xlu0 %1252, %v62
    %v1254 = vpop.permute.xlu0 %1253
    %1256 = vset.pattern.permute.xlu0 5
    %1257 = vperm.xlu0 %1256, %v63
    %v1258 = vpop.permute.xlu0 %1257
    %1260 = vset.pattern.permute.xlu0 5
    %1261 = vperm.xlu0 %1260, %v64
    %v1262 = vpop.permute.xlu0 %1261
    %1264 = vset.pattern.permute.xlu0 5
    %1265 = vperm.xlu0 %1264, %v65
    %v1266 = vpop.permute.xlu0 %1265
    %1268 = vset.pattern.permute.xlu0 5
    %1269 = vperm.xlu0 %1268, %v66
    %v1270 = vpop.permute.xlu0 %1269
    %1272 = vset.pattern.permute.xlu0 5
    %1273 = vperm.xlu0 %1272, %v67
    %v1274 = vpop.permute.xlu0 %1273
    %v1276 = vperm.slane %v34, 5
    %v1277 = vmax.f32 %v1214, %v1276
    %v1278 = vmax.f32 %v1218, %v1276
    %v1279 = vmax.f32 %v1222, %v1276
    %v1280 = vmax.f32 %v1226, %v1276
    %v1281 = vmax.f32 %v1230, %v1276
    %v1282 = vmax.f32 %v1234, %v1276
    %v1283 = vmax.f32 %v1238, %v1276
    %v1284 = vmax.f32 %v1242, %v1276
    %v1285 = vmax.f32 %v1246, %v1276
    %v1286 = vmax.f32 %v1250, %v1276
    %v1287 = vmax.f32 %v1254, %v1276
    %v1288 = vmax.f32 %v1258, %v1276
    %v1289 = vmax.f32 %v1262, %v1276
    %v1290 = vmax.f32 %v1266, %v1276
    %v1291 = vmax.f32 %v1270, %v1276
    %v1292 = vmax.f32 %v1274, %v1276
    %v1293 = vsub.f32 %v1196, %v1277
    %v1294 = vsub.f32 %v1197, %v1278
    %v1295 = vsub.f32 %v1198, %v1279
    %v1296 = vsub.f32 %v1199, %v1280
    %v1297 = vsub.f32 %v1200, %v1281
    %v1298 = vsub.f32 %v1201, %v1282
    %v1299 = vsub.f32 %v1202, %v1283
    %v1300 = vsub.f32 %v1203, %v1284
    %v1301 = vsub.f32 %v1204, %v1285
    %v1302 = vsub.f32 %v1205, %v1286
    %v1303 = vsub.f32 %v1206, %v1287
    %v1304 = vsub.f32 %v1207, %v1288
    %v1305 = vsub.f32 %v1208, %v1289
    %v1306 = vsub.f32 %v1209, %v1290
    %v1307 = vsub.f32 %v1210, %v1291
    %v1308 = vsub.f32 %v1211, %v1292
    %v1309 = vmax.f32 %v1115, 0.0
    %v1310 = vmax.f32 %v1116, 0.0
    %v1311 = vmax.f32 %v1117, 0.0
    %v1312 = vmax.f32 %v1118, 0.0
    %v1313 = vmax.f32 %v1119, 0.0
    %v1314 = vmax.f32 %v1120, 0.0
    %v1315 = vmax.f32 %v1121, 0.0
    %v1316 = vmax.f32 %v1122, 0.0
    %v1317 = vmax.f32 %v1123, 0.0
    %v1318 = vmax.f32 %v1124, 0.0
    %v1319 = vmax.f32 %v1125, 0.0
    %v1320 = vmax.f32 %v1126, 0.0
    %v1321 = vmax.f32 %v1127, 0.0
    %v1322 = vmax.f32 %v1128, 0.0
    %v1323 = vmax.f32 %v1129, 0.0
    %v1324 = vmax.f32 %v1130, 0.0
    %v1325 = vmax.f32 %v1293, 0.0
    %v1326 = vmax.f32 %v1294, 0.0
    %v1327 = vmax.f32 %v1295, 0.0
    %v1328 = vmax.f32 %v1296, 0.0
    %v1329 = vmax.f32 %v1297, 0.0
    %v1330 = vmax.f32 %v1298, 0.0
    %v1331 = vmax.f32 %v1299, 0.0
    %v1332 = vmax.f32 %v1300, 0.0
    %v1333 = vmax.f32 %v1301, 0.0
    %v1334 = vmax.f32 %v1302, 0.0
    %v1335 = vmax.f32 %v1303, 0.0
    %v1336 = vmax.f32 %v1304, 0.0
    %v1337 = vmax.f32 %v1305, 0.0
    %v1338 = vmax.f32 %v1306, 0.0
    %v1339 = vmax.f32 %v1307, 0.0
    %v1340 = vmax.f32 %v1308, 0.0
    %v1341 = vmul.f32 %v1309, %v1325
    %v1342 = vmul.f32 %v1310, %v1326
    %v1343 = vmul.f32 %v1311, %v1327
    %v1344 = vmul.f32 %v1312, %v1328
    %v1345 = vmul.f32 %v1313, %v1329
    %v1346 = vmul.f32 %v1314, %v1330
    %v1347 = vmul.f32 %v1315, %v1331
    %v1348 = vmul.f32 %v1316, %v1332
    %v1349 = vmul.f32 %v1317, %v1333
    %v1350 = vmul.f32 %v1318, %v1334
    %v1351 = vmul.f32 %v1319, %v1335
    %v1352 = vmul.f32 %v1320, %v1336
    %v1353 = vmul.f32 %v1321, %v1337
    %v1354 = vmul.f32 %v1322, %v1338
    %v1355 = vmul.f32 %v1323, %v1339
    %v1356 = vmul.f32 %v1324, %v1340
    %1357 = vset.pattern.permute.xlu0 8
    %1358 = vperm.xlu0 %1357, %v52
    %v1359 = vpop.permute.xlu0 %1358
    %1361 = vset.pattern.permute.xlu0 8
    %1362 = vperm.xlu0 %1361, %v53
    %v1363 = vpop.permute.xlu0 %1362
    %1365 = vset.pattern.permute.xlu0 8
    %1366 = vperm.xlu0 %1365, %v54
    %v1367 = vpop.permute.xlu0 %1366
    %1369 = vset.pattern.permute.xlu0 8
    %1370 = vperm.xlu0 %1369, %v55
    %v1371 = vpop.permute.xlu0 %1370
    %1373 = vset.pattern.permute.xlu0 8
    %1374 = vperm.xlu0 %1373, %v56
    %v1375 = vpop.permute.xlu0 %1374
    %1377 = vset.pattern.permute.xlu0 8
    %1378 = vperm.xlu0 %1377, %v57
    %v1379 = vpop.permute.xlu0 %1378
    %1381 = vset.pattern.permute.xlu0 8
    %1382 = vperm.xlu0 %1381, %v58
    %v1383 = vpop.permute.xlu0 %1382
    %1385 = vset.pattern.permute.xlu0 8
    %1386 = vperm.xlu0 %1385, %v59
    %v1387 = vpop.permute.xlu0 %1386
    %1389 = vset.pattern.permute.xlu0 8
    %1390 = vperm.xlu0 %1389, %v60
    %v1391 = vpop.permute.xlu0 %1390
    %1393 = vset.pattern.permute.xlu0 8
    %1394 = vperm.xlu0 %1393, %v61
    %v1395 = vpop.permute.xlu0 %1394
    %1397 = vset.pattern.permute.xlu0 8
    %1398 = vperm.xlu0 %1397, %v62
    %v1399 = vpop.permute.xlu0 %1398
    %1401 = vset.pattern.permute.xlu0 8
    %1402 = vperm.xlu0 %1401, %v63
    %v1403 = vpop.permute.xlu0 %1402
    %1405 = vset.pattern.permute.xlu0 8
    %1406 = vperm.xlu0 %1405, %v64
    %v1407 = vpop.permute.xlu0 %1406
    %1409 = vset.pattern.permute.xlu0 8
    %1410 = vperm.xlu0 %1409, %v65
    %v1411 = vpop.permute.xlu0 %1410
    %1413 = vset.pattern.permute.xlu0 8
    %1414 = vperm.xlu0 %1413, %v66
    %v1415 = vpop.permute.xlu0 %1414
    %1417 = vset.pattern.permute.xlu0 8
    %1418 = vperm.xlu0 %1417, %v67
    %v1419 = vpop.permute.xlu0 %1418
    %v1421 = vperm.slane %v35, 0
    %v1422 = vadd.f32 %v1359, %v1421
    %v1423 = vadd.f32 %v1363, %v1421
    %v1424 = vadd.f32 %v1367, %v1421
    %v1425 = vadd.f32 %v1371, %v1421
    %v1426 = vadd.f32 %v1375, %v1421
    %v1427 = vadd.f32 %v1379, %v1421
    %v1428 = vadd.f32 %v1383, %v1421
    %v1429 = vadd.f32 %v1387, %v1421
    %v1430 = vadd.f32 %v1391, %v1421
    %v1431 = vadd.f32 %v1395, %v1421
    %v1432 = vadd.f32 %v1399, %v1421
    %v1433 = vadd.f32 %v1403, %v1421
    %v1434 = vadd.f32 %v1407, %v1421
    %v1435 = vadd.f32 %v1411, %v1421
    %v1436 = vadd.f32 %v1415, %v1421
    %v1437 = vadd.f32 %v1419, %v1421
    %v1438 = vsub.f32 %v1422, %v1341
    %v1439 = vsub.f32 %v1423, %v1342
    %v1440 = vsub.f32 %v1424, %v1343
    %v1441 = vsub.f32 %v1425, %v1344
    %v1442 = vsub.f32 %v1426, %v1345
    %v1443 = vsub.f32 %v1427, %v1346
    %v1444 = vsub.f32 %v1428, %v1347
    %v1445 = vsub.f32 %v1429, %v1348
    %v1446 = vsub.f32 %v1430, %v1349
    %v1447 = vsub.f32 %v1431, %v1350
    %v1448 = vsub.f32 %v1432, %v1351
    %v1449 = vsub.f32 %v1433, %v1352
    %v1450 = vsub.f32 %v1434, %v1353
    %v1451 = vsub.f32 %v1435, %v1354
    %v1452 = vsub.f32 %v1436, %v1355
    %v1453 = vsub.f32 %v1437, %v1356
    %v1454 = vrcp.pop %v1438
    %v1455 = vrcp.pop %v1439
    %v1456 = vrcp.pop %v1440
    %v1457 = vrcp.pop %v1441
    %v1458 = vrcp.pop %v1442
    %v1459 = vrcp.pop %v1443
    %v1460 = vrcp.pop %v1444
    %v1461 = vrcp.pop %v1445
    %v1462 = vrcp.pop %v1446
    %v1463 = vrcp.pop %v1447
    %v1464 = vrcp.pop %v1448
    %v1465 = vrcp.pop %v1449
    %v1466 = vrcp.pop %v1450
    %v1467 = vrcp.pop %v1451
    %v1468 = vrcp.pop %v1452
    %v1469 = vrcp.pop %v1453
    %v1470 = vmul.f32 %v1341, %v1454
    %v1471 = vmul.f32 %v1342, %v1455
    %v1472 = vmul.f32 %v1343, %v1456
    %v1473 = vmul.f32 %v1344, %v1457
    %v1474 = vmul.f32 %v1345, %v1458
    %v1475 = vmul.f32 %v1346, %v1459
    %v1476 = vmul.f32 %v1347, %v1460
    %v1477 = vmul.f32 %v1348, %v1461
    %v1478 = vmul.f32 %v1349, %v1462
    %v1479 = vmul.f32 %v1350, %v1463
    %v1480 = vmul.f32 %v1351, %v1464
    %v1481 = vmul.f32 %v1352, %v1465
    %v1482 = vmul.f32 %v1353, %v1466
    %v1483 = vmul.f32 %v1354, %v1467
    %v1484 = vmul.f32 %v1355, %v1468
    %v1485 = vmul.f32 %v1356, %v1469
    %v1486 = vadd.f32 %v729, %v791
    %v1487 = vadd.f32 %v733, %v791
    %v1488 = vadd.f32 %v737, %v791
    %v1489 = vadd.f32 %v741, %v791
    %v1490 = vadd.f32 %v745, %v791
    %v1491 = vadd.f32 %v749, %v791
    %v1492 = vadd.f32 %v753, %v791
    %v1493 = vadd.f32 %v757, %v791
    %v1494 = vadd.f32 %v761, %v791
    %v1495 = vadd.f32 %v765, %v791
    %v1496 = vadd.f32 %v769, %v791
    %v1497 = vadd.f32 %v773, %v791
    %v1498 = vadd.f32 %v777, %v791
    %v1499 = vadd.f32 %v781, %v791
    %v1500 = vadd.f32 %v785, %v791
    %v1501 = vadd.f32 %v789, %v791
    %v1502 = vsub.f32 %v1486, %v1115
    %v1503 = vsub.f32 %v1487, %v1116
    %v1504 = vsub.f32 %v1488, %v1117
    %v1505 = vsub.f32 %v1489, %v1118
    %v1506 = vsub.f32 %v1490, %v1119
    %v1507 = vsub.f32 %v1491, %v1120
    %v1508 = vsub.f32 %v1492, %v1121
    %v1509 = vsub.f32 %v1493, %v1122
    %v1510 = vsub.f32 %v1494, %v1123
    %v1511 = vsub.f32 %v1495, %v1124
    %v1512 = vsub.f32 %v1496, %v1125
    %v1513 = vsub.f32 %v1497, %v1126
    %v1514 = vsub.f32 %v1498, %v1127
    %v1515 = vsub.f32 %v1499, %v1128
    %v1516 = vsub.f32 %v1500, %v1129
    %v1517 = vsub.f32 %v1501, %v1130
    %v1518 = vadd.f32 %v842, %v904
    %v1519 = vadd.f32 %v846, %v904
    %v1520 = vadd.f32 %v850, %v904
    %v1521 = vadd.f32 %v854, %v904
    %v1522 = vadd.f32 %v858, %v904
    %v1523 = vadd.f32 %v862, %v904
    %v1524 = vadd.f32 %v866, %v904
    %v1525 = vadd.f32 %v870, %v904
    %v1526 = vadd.f32 %v874, %v904
    %v1527 = vadd.f32 %v878, %v904
    %v1528 = vadd.f32 %v882, %v904
    %v1529 = vadd.f32 %v886, %v904
    %v1530 = vadd.f32 %v890, %v904
    %v1531 = vadd.f32 %v894, %v904
    %v1532 = vadd.f32 %v898, %v904
    %v1533 = vadd.f32 %v902, %v904
    %v1534 = vsub.f32 %v1518, %v1293
    %v1535 = vsub.f32 %v1519, %v1294
    %v1536 = vsub.f32 %v1520, %v1295
    %v1537 = vsub.f32 %v1521, %v1296
    %v1538 = vsub.f32 %v1522, %v1297
    %v1539 = vsub.f32 %v1523, %v1298
    %v1540 = vsub.f32 %v1524, %v1299
    %v1541 = vsub.f32 %v1525, %v1300
    %v1542 = vsub.f32 %v1526, %v1301
    %v1543 = vsub.f32 %v1527, %v1302
    %v1544 = vsub.f32 %v1528, %v1303
    %v1545 = vsub.f32 %v1529, %v1304
    %v1546 = vsub.f32 %v1530, %v1305
    %v1547 = vsub.f32 %v1531, %v1306
    %v1548 = vsub.f32 %v1532, %v1307
    %v1549 = vsub.f32 %v1533, %v1308
    %v1550 = vmul.f32 %v1502, %v1534
    %v1551 = vmul.f32 %v1503, %v1535
    %v1552 = vmul.f32 %v1504, %v1536
    %v1553 = vmul.f32 %v1505, %v1537
    %v1554 = vmul.f32 %v1506, %v1538
    %v1555 = vmul.f32 %v1507, %v1539
    %v1556 = vmul.f32 %v1508, %v1540
    %v1557 = vmul.f32 %v1509, %v1541
    %v1558 = vmul.f32 %v1510, %v1542
    %v1559 = vmul.f32 %v1511, %v1543
    %v1560 = vmul.f32 %v1512, %v1544
    %v1561 = vmul.f32 %v1513, %v1545
    %v1562 = vmul.f32 %v1514, %v1546
    %v1563 = vmul.f32 %v1515, %v1547
    %v1564 = vmul.f32 %v1516, %v1548
    %v1565 = vmul.f32 %v1517, %v1549
    %v1566 = vsub.f32 %v1550, %v1438
    %v1567 = vsub.f32 %v1551, %v1439
    %v1568 = vsub.f32 %v1552, %v1440
    %v1569 = vsub.f32 %v1553, %v1441
    %v1570 = vsub.f32 %v1554, %v1442
    %v1571 = vsub.f32 %v1555, %v1443
    %v1572 = vsub.f32 %v1556, %v1444
    %v1573 = vsub.f32 %v1557, %v1445
    %v1574 = vsub.f32 %v1558, %v1446
    %v1575 = vsub.f32 %v1559, %v1447
    %v1576 = vsub.f32 %v1560, %v1448
    %v1577 = vsub.f32 %v1561, %v1449
    %v1578 = vsub.f32 %v1562, %v1450
    %v1579 = vsub.f32 %v1563, %v1451
    %v1580 = vsub.f32 %v1564, %v1452
    %v1581 = vsub.f32 %v1565, %v1453
    %v1582 = vadd.f32 %v1550, 1e-06
    %v1583 = vadd.f32 %v1551, 1e-06
    %v1584 = vadd.f32 %v1552, 1e-06
    %v1585 = vadd.f32 %v1553, 1e-06
    %v1586 = vadd.f32 %v1554, 1e-06
    %v1587 = vadd.f32 %v1555, 1e-06
    %v1588 = vadd.f32 %v1556, 1e-06
    %v1589 = vadd.f32 %v1557, 1e-06
    %v1590 = vadd.f32 %v1558, 1e-06
    %v1591 = vadd.f32 %v1559, 1e-06
    %v1592 = vadd.f32 %v1560, 1e-06
    %v1593 = vadd.f32 %v1561, 1e-06
    %v1594 = vadd.f32 %v1562, 1e-06
    %v1595 = vadd.f32 %v1563, 1e-06
    %v1596 = vadd.f32 %v1564, 1e-06
    %v1597 = vadd.f32 %v1565, 1e-06
    %v1598 = vrcp.pop %v1582
    %v1599 = vrcp.pop %v1583
    %v1600 = vrcp.pop %v1584
    %v1601 = vrcp.pop %v1585
    %v1602 = vrcp.pop %v1586
    %v1603 = vrcp.pop %v1587
    %v1604 = vrcp.pop %v1588
    %v1605 = vrcp.pop %v1589
    %v1606 = vrcp.pop %v1590
    %v1607 = vrcp.pop %v1591
    %v1608 = vrcp.pop %v1592
    %v1609 = vrcp.pop %v1593
    %v1610 = vrcp.pop %v1594
    %v1611 = vrcp.pop %v1595
    %v1612 = vrcp.pop %v1596
    %v1613 = vrcp.pop %v1597
    %v1614 = vmul.f32 %v1566, %v1598
    %v1615 = vmul.f32 %v1567, %v1599
    %v1616 = vmul.f32 %v1568, %v1600
    %v1617 = vmul.f32 %v1569, %v1601
    %v1618 = vmul.f32 %v1570, %v1602
    %v1619 = vmul.f32 %v1571, %v1603
    %v1620 = vmul.f32 %v1572, %v1604
    %v1621 = vmul.f32 %v1573, %v1605
    %v1622 = vmul.f32 %v1574, %v1606
    %v1623 = vmul.f32 %v1575, %v1607
    %v1624 = vmul.f32 %v1576, %v1608
    %v1625 = vmul.f32 %v1577, %v1609
    %v1626 = vmul.f32 %v1578, %v1610
    %v1627 = vmul.f32 %v1579, %v1611
    %v1628 = vmul.f32 %v1580, %v1612
    %v1629 = vmul.f32 %v1581, %v1613
    %v1630 = vsub.f32 %v1470, %v1614
    %v1631 = vsub.f32 %v1471, %v1615
    %v1632 = vsub.f32 %v1472, %v1616
    %v1633 = vsub.f32 %v1473, %v1617
    %v1634 = vsub.f32 %v1474, %v1618
    %v1635 = vsub.f32 %v1475, %v1619
    %v1636 = vsub.f32 %v1476, %v1620
    %v1637 = vsub.f32 %v1477, %v1621
    %v1638 = vsub.f32 %v1478, %v1622
    %v1639 = vsub.f32 %v1479, %v1623
    %v1640 = vsub.f32 %v1480, %v1624
    %v1641 = vsub.f32 %v1481, %v1625
    %v1642 = vsub.f32 %v1482, %v1626
    %v1643 = vsub.f32 %v1483, %v1627
    %v1644 = vsub.f32 %v1484, %v1628
    %v1645 = vsub.f32 %v1485, %v1629
    %v1646 = vadd.f32 %v937, %v485
    %v1647 = vadd.f32 %v938, %v486
    %v1648 = vadd.f32 %v939, %v487
    %v1649 = vadd.f32 %v940, %v488
    %v1650 = vadd.f32 %v941, %v489
    %v1651 = vadd.f32 %v942, %v490
    %v1652 = vadd.f32 %v943, %v491
    %v1653 = vadd.f32 %v944, %v492
    %v1654 = vadd.f32 %v945, %v493
    %v1655 = vadd.f32 %v946, %v494
    %v1656 = vadd.f32 %v947, %v495
    %v1657 = vadd.f32 %v948, %v496
    %v1658 = vadd.f32 %v949, %v497
    %v1659 = vadd.f32 %v950, %v498
    %v1660 = vadd.f32 %v951, %v499
    %v1661 = vadd.f32 %v952, %v500
    %v1662 = vsub.f32 %v1646, %v1630
    %v1663 = vsub.f32 %v1647, %v1631
    %v1664 = vsub.f32 %v1648, %v1632
    %v1665 = vsub.f32 %v1649, %v1633
    %v1666 = vsub.f32 %v1650, %v1634
    %v1667 = vsub.f32 %v1651, %v1635
    %v1668 = vsub.f32 %v1652, %v1636
    %v1669 = vsub.f32 %v1653, %v1637
    %v1670 = vsub.f32 %v1654, %v1638
    %v1671 = vsub.f32 %v1655, %v1639
    %v1672 = vsub.f32 %v1656, %v1640
    %v1673 = vsub.f32 %v1657, %v1641
    %v1674 = vsub.f32 %v1658, %v1642
    %v1675 = vsub.f32 %v1659, %v1643
    %v1676 = vsub.f32 %v1660, %v1644
    %v1677 = vsub.f32 %v1661, %v1645
    %1678 = vst [vmem:[#allocation5] sm:$0xff] %v1662
    %1679 = vst [vmem:[#allocation5 + $0x8] sm:$0xff] %v1663
    %1680 = vst [vmem:[#allocation5 + $0x10] sm:$0xff] %v1664
    %1681 = vst [vmem:[#allocation5 + $0x18] sm:$0xff] %v1665
    %1682 = vst [vmem:[#allocation5 + $0x20] sm:$0xff] %v1666
    %1683 = vst [vmem:[#allocation5 + $0x28] sm:$0xff] %v1667
    %1684 = vst [vmem:[#allocation5 + $0x30] sm:$0xff] %v1668
    %1685 = vst [vmem:[#allocation5 + $0x38] sm:$0xff] %v1669
    %1686 = vst [vmem:[#allocation5 + $0x40] sm:$0xff] %v1670
    %1687 = vst [vmem:[#allocation5 + $0x48] sm:$0xff] %v1671
    %1688 = vst [vmem:[#allocation5 + $0x50] sm:$0xff] %v1672
    %1689 = vst [vmem:[#allocation5 + $0x58] sm:$0xff] %v1673
    %1690 = vst [vmem:[#allocation5 + $0x60] sm:$0xff] %v1674
    %1691 = vst [vmem:[#allocation5 + $0x68] sm:$0xff] %v1675
    %1692 = vst [vmem:[#allocation5 + $0x70] sm:$0xff] %v1676
    %1693 = vst [vmem:[#allocation5 + $0x78] sm:$0xff] %v1677
    // Predicated region
    $region22: #{tpu_custom_call.1} parent=1 // pred_check
      _
    $region23: #{tpu_custom_call.1} parent=1 // pred_check_branch
      %1695 = sbr.rel (0) target = $region25
    $region24: #{tpu_custom_call.1} parent=1 // pred_region
      %1697 = vsyncadd [#allocation4], 0
      %s1698 = sshll.u32 [#allocation5], 4
      %s1699 = int_to_ptr.vmem [resolvable:$true] %s1698
      %s1700 = sshll.u32 %s4, 4
      %s1701 = int_to_ptr.hbm [resolvable:$true] %s1700
      %1706 = dma.vmem_to_hbm [thread:$0]  %s1699, 2048, %s1701, [#allocation4], 128, 128, 8
    $region25: #{tpu_custom_call.1} parent=1 // pred_fallthru
      _
    // Predicated region
    $region26: #{tpu_custom_call.1} parent=1 // pred_check
      _
    $region27: #{tpu_custom_call.1} parent=1 // pred_check_branch
      %1708 = sbr.rel (0) target = $region29
    $region28: #{tpu_custom_call.1} parent=1 // pred_region
      %1710 = dma.done [#allocation4], 2048
    $region29: #{tpu_custom_call.1} parent=1 // pred_fallthru
      _
    %1711 = vsyncpa [#allocation3], 1
    %1712 = vsyncpa [#allocation4], 1

</llo_original>
